<compile_context>
chip_gen: v6e
topology: v6e:2x2x1
jax: 0.10.0
libtpu: 0.0.40
codegen_flags: <defaults>
</compile_context>

<pallas_src>
import numpy as np
import jax
import jax.numpy as jnp
from jax import lax
from jax.experimental import pallas as pl
from jax.experimental.pallas import tpu as pltpu

# ---------------- configuration (small but structurally faithful) ----------------
B = 2                    # batch
C_IN = 4                 # CNN in_channels (fixed to 4 in init_cnn)
C_CNN = 4                # channels_cnn
GRID = 8                 # grid_size_in = grid_size_out (default 16; 8 keeps it small)
H = W = 2 * GRID         # input spatial = 16
HP = WP = GRID           # spatial after 2x2 max-pool = 8
HO = WO = 2 * GRID + 1   # PosMap spatial = 17
NPOS = HO * WO           # 289 real positions
NPAD = 384               # 289 padded up to 3 * 128 lanes
ENC_H_DIM = 32           # decoder_h_dim fed into traj2cnn
MLP_DIM = 32
BOTTLENECK = HP * WP     # 64
KDEC = (C_CNN + 1) * BOTTLENECK   # 320 = decoder contraction dim (traj + 4 enc channels)
TEMP = 1.0
IMG_SCALING = 0.25
EPS = 1e-10
BN_EPS = 1e-5
NEG = -1e30

VMEM = pl.BlockSpec(memory_space=pltpu.MemorySpace.VMEM)
SMEM = pl.BlockSpec(memory_space=pltpu.MemorySpace.SMEM)


# ------------------------------- fused Pallas kernel ------------------------------
def goal_global_kernel(bt_ref, s_ref, wc_ref, gamma_ref, beta_ref,
                       wm1_ref, bm1_ref, wm2_ref, bm2_ref,
                       tdt_ref, tde_ref, bmap_ref, u_ref, h_ref, maps_ref):
    # ---------- encoder: Conv2d(4,4,3,1,1) as one matmul on the wrapper-built im2col ----
    # s_ref: (36, 512) with rows (kh, kw, ci) and lanes ordered (pool_member, b, pi, pj).
    y = jnp.dot(wc_ref[...], s_ref[...], preferred_element_type=jnp.float32)   # (4, 512)

    # BatchNorm2d(4) in training mode (biased batch variance), folded into one per-channel
    # scale/shift, then ReLU.  Rows are channels and the 512 lanes cover all (b, i, j), so
    # per-row stats ARE the per-channel batch stats.  The Conv2d bias is a per-channel
    # constant and cancels exactly under the batch-mean subtraction, so it is omitted.
    mean = jnp.mean(y, axis=1, keepdims=True)                      # (4, 1)
    ex2 = jnp.mean(y * y, axis=1, keepdims=True)                   # (4, 1)
    var = ex2 - mean * mean
    scale = gamma_ref[...] * lax.rsqrt(var + BN_EPS)               # (4, 1)
    shift = beta_ref[...] - mean * scale
    feat = jnp.maximum(y * scale + shift, 0.0)                     # (4, 512)

    # ---------- MaxPool2d(2,2): lanes are (member, b, pi, pj) -> three maxes over
    # 128-lane-aligned slices (pure VPU, zero relayout).
    pooled = jnp.maximum(
        jnp.maximum(feat[:, 0:128], feat[:, 128:256]),
        jnp.maximum(feat[:, 256:384], feat[:, 384:512]))           # (4, 128), lanes (b, q)

    # ---------- flatten to enc (B, C*64), lanes (c, pi, pj) ----------
    # The batch index must move from lanes to sublanes here; this ~2 KB move is the single
    # unavoidable relayout in the kernel and is expressed with static slices + concats.
    enc = jnp.concatenate(
        [jnp.concatenate([pooled[c:c + 1, b * BOTTLENECK:(b + 1) * BOTTLENECK]
                          for c in range(C_CNN)], axis=1)
         for b in range(B)], axis=0)                               # (B, 256)

    # ---------- traj2cnn: Linear(32,32) -> tanh -> Linear(32,64) -> tanh ----------
    t1 = jnp.tanh(jnp.dot(h_ref[...], wm1_ref[...],
                          preferred_element_type=jnp.float32) + bm1_ref[...])
    traj = jnp.tanh(jnp.dot(t1, wm2_ref[...],
                            preferred_element_type=jnp.float32) + bm2_ref[...])   # (B, 64)

    # ---------- decoder: ConvTranspose2d(5,1,3,2,0) as two bf16 MXU matmuls ----------
    # (traj block + enc block of the dense 320x384 operator; avoids a lane-offset concat)
    ys = (jnp.dot(traj.astype(jnp.bfloat16), tdt_ref[...],
                  preferred_element_type=jnp.float32)
          + jnp.dot(enc.astype(jnp.bfloat16), tde_ref[...],
                    preferred_element_type=jnp.float32)
          + bt_ref[0])                                             # (B, 384)

    col = lax.broadcasted_iota(jnp.int32, (B, NPAD), 1)
    ys_m = jnp.where(col < NPOS, ys, NEG)                          # mask padded columns

    # ---------- gumbel noise from wrapper-supplied uniforms ----------
    # TODO(synk): torch's CPU RNG stream (uniform_/rand) is not reproduced; uniforms come
    # from jax.random in the wrapper (one fresh key per call).
    u = u_ref[...]                                                 # (3B, 384)
    g = -jnp.log(EPS - jnp.log(u[0:B] + EPS))                      # sample_gumbel_like

    # ---------- ONE stacked softmax pass over (gumbel logits ; plain scores) ----------
    st = jnp.concatenate([(ys_m + g) * (1.0 / TEMP), ys_m], axis=0)    # (2B, 384)
    m = jnp.max(st, axis=1, keepdims=True)
    e = jnp.exp(st - m)
    p = e / jnp.sum(e, axis=1, keepdims=True)                      # exact division
    soft_g = p[0:B]                                                # gumbel softmax
    soft = p[B:2 * B]                                              # plain softmax

    # hard one-hot at the first argmax of soft_g (scatter_ semantics, force_hard=True)
    mval = jnp.max(soft_g, axis=1, keepdims=True)
    cand = jnp.where(soft_g == mval, col, NPAD)
    amin = jnp.min(cand, axis=1, keepdims=True)
    onehot = (col == amin).astype(jnp.float32)

    # ---------- final_pos = sum(noisy gumbel map * hard map) * img_scaling ----------
    mapx = bmap_ref[0:1, :] + u[B:2 * B]
    mapy = bmap_ref[1:2, :] + u[2 * B:3 * B]
    fx = jnp.sum(mapx * onehot, axis=1, keepdims=True) * IMG_SCALING
    fy = jnp.sum(mapy * onehot, axis=1, keepdims=True) * IMG_SCALING
    # stash fx/fy in padded lane columns NPOS / NPOS+1 of the y_scores rows
    row0 = jnp.where(col == NPOS, fx, jnp.where(col == NPOS + 1, fy, ys_m))

    # ---------- packed lane-dense output, written as direct sublane-slice stores ----------
    # rows [0:B]=y_scores(+final_pos stash), [B:2B]=hard one-hot, [2B:3B]=gumbel softmax,
    # [3B:4B]=plain softmax
    maps_ref[0:B, :] = row0
    maps_ref[B:2 * B, :] = onehot
    maps_ref[2 * B:3 * B, :] = jnp.maximum(soft_g, EPS)            # torch clamps soft_g only
    maps_ref[3 * B:4 * B, :] = soft
    # TODO(synk): forward-only; the straight-through gumbel gradient (custom_vjp) is not
    # implemented.


# -------------------------- parameter setup (deterministic) ----------------------
def init_params(key):
    ks = jax.random.split(key, 6)
    # Conv2d(4,4,3,1,1): weight laid out (C_out, (kh, kw, ci)) to match the im2col rows.
    w_conv = jax.random.normal(ks[0], (C_CNN, C_IN, 3, 3), jnp.float32) * 0.2
    wc = w_conv.transpose(2, 3, 1, 0).reshape(9 * C_IN, C_CNN).T        # (4, 36)
    gamma = jnp.ones((C_CNN, 1), jnp.float32)                           # BN default init
    beta = jnp.zeros((C_CNN, 1), jnp.float32)
    # traj2cnn: Linear(32,32) tanh, Linear(32,64) tanh  (stored as (in, out))
    wm1 = jax.random.normal(ks[1], (ENC_H_DIM, MLP_DIM), jnp.float32) * 0.2
    bm1 = jax.random.normal(ks[2], (1, MLP_DIM), jnp.float32) * 0.05
    wm2 = jax.random.normal(ks[3], (MLP_DIM, BOTTLENECK), jnp.float32) * 0.2
    bm2 = jax.random.normal(ks[4], (1, BOTTLENECK), jnp.float32) * 0.05
    # ConvTranspose2d(5,1,3,stride=2,pad=0) lowered to a dense (320, NPAD) operator with
    # traj rows first (torch.cat order), columns zero-padded to 384, stored bf16 for MXU,
    # split into its traj (64 rows) and enc (256 rows) blocks.
    wt = np.asarray(jax.random.normal(ks[5], (C_CNN + 1, 1, 3, 3), jnp.float32)) * 0.2
    T = np.zeros((KDEC, NPAD), np.float32)
    for ci in range(C_CNN + 1):
        for i in range(HP):
            for j in range(WP):
                row = ci * BOTTLENECK + i * WP + j
                for kh in range(3):
                    for kw in range(3):
                        T[row, (2 * i + kh) * WO + (2 * j + kw)] += wt[ci, 0, kh, kw]
    td_traj = jnp.asarray(T[:BOTTLENECK], jnp.bfloat16)            # (64, 384)
    td_enc = jnp.asarray(T[BOTTLENECK:], jnp.bfloat16)             # (256, 384)
    bt = jnp.full((1,), 0.01, jnp.float32)                         # ConvTranspose bias
    # get_gumbel_map base grid: row 0 = col offset (x), row 1 = row offset (y); zero pad.
    coords = np.arange(2 * GRID + 1)
    ii, jj = np.meshgrid(coords, coords, indexing='ij')
    bm = np.zeros((2, NPAD), np.float32)
    bm[0, :NPOS] = (jj - GRID).reshape(-1)
    bm[1, :NPOS] = (ii - GRID).reshape(-1)
    return dict(wc=wc, gamma=gamma, beta=beta, wm1=wm1, bm1=bm1, wm2=wm2, bm2=bm2,
                td_traj=td_traj, td_enc=td_enc, bt=bt, base_maps=jnp.asarray(bm))


# --------------------------- wrapper-side im2col (XLA glue) -----------------------
def _im2col_pool_layout(image):
    """(B,4,16,16) image -> (36, 512) f32 with rows (kh, kw, ci) and lanes
    (pool_member = 2*di+dj, b, pi, pj), so the kernel's pool slices are 128-aligned."""
    xpad = jnp.pad(image, ((0, 0), (0, 0), (1, 1), (1, 1)))        # (B, C_IN, 18, 18)
    rows = []
    for kh in range(3):
        for kw in range(3):
            p = xpad[:, :, kh:kh + H, kw:kw + W]                   # (B, C, 16, 16)
            p = p.reshape(B, C_IN, HP, 2, WP, 2)                   # (b, ci, pi, di, pj, dj)
            p = p.transpose(1, 3, 5, 0, 2, 4)                      # (ci, di, dj, b, pi, pj)
            rows.append(p.reshape(C_IN, 4 * B * HP * WP))          # (4, 512)
    return jnp.concatenate(rows, axis=0)                           # (36, 512)


# --------------------------------- forward ---------------------------------------
@jax.jit
def goal_global_forward(params, image, h, key):
    s_mat = _im2col_pool_layout(image)                             # hoisted im2col
    u = jax.random.uniform(key, (3 * B, NPAD), jnp.float32)        # gumbel + map jitter
    maps = pl.pallas_call(
        goal_global_kernel,
        out_shape=jax.ShapeDtypeStruct((4 * B, NPAD), jnp.float32),
        in_specs=[SMEM] + [VMEM] * 13,
        out_specs=VMEM,
    )(params['bt'], s_mat, params['wc'], params['gamma'], params['beta'],
      params['wm1'], params['bm1'], params['wm2'], params['bm2'],
      params['td_traj'], params['td_enc'], params['base_maps'], u, h)
    y_scores = maps[0:B, :NPOS]                                    # (B, 289)
    final_pos = maps[0:B, NPOS:NPOS + 2].reshape(1, B, 2)          # stashed scaled position
    final_pos_map_decoder = maps[B:2 * B, :NPOS].reshape(B, 1, HO, WO)   # hard one-hot
    final_pos_map = maps[2 * B:3 * B, :NPOS].reshape(B, 1, HO, WO)       # gumbel softmax
    y_softmax = maps[3 * B:4 * B, :NPOS].reshape(B, 1, HO, WO)           # plain softmax
    return final_pos, final_pos_map_decoder, final_pos_map, y_softmax, y_scores


if __name__ == "__main__":
    key = jax.random.PRNGKey(0)
    kp, kx, khid, kn = jax.random.split(key, 4)
    params = init_params(kp)
    image = jax.random.normal(kx, (B, C_IN, H, W), jnp.float32)    # features, NCHW
    h = jax.random.normal(khid, (B, ENC_H_DIM), jnp.float32)       # decoder hidden state

    outs = jax.block_until_ready(goal_global_forward(params, image, h, kn))
    final_pos, hard_map, soft_g_map, soft_map, y_scores = outs

    assert final_pos.shape == (1, B, 2)
    assert hard_map.shape == (B, 1, HO, WO)
    assert soft_g_map.shape == (B, 1, HO, WO)
    assert soft_map.shape == (B, 1, HO, WO)
    assert y_scores.shape == (B, NPOS)
    hm = np.asarray(hard_map).reshape(B, -1)
    assert np.allclose(hm.sum(-1), 1.0, atol=1e-6)                 # exactly one-hot
    assert np.allclose(hm.max(-1), 1.0, atol=1e-6)
    assert np.allclose(np.asarray(soft_map).reshape(B, -1).sum(-1), 1.0, atol=1e-4)
    assert np.allclose(np.asarray(soft_g_map).reshape(B, -1).sum(-1), 1.0, atol=1e-4)
    fp = np.asarray(final_pos)
    assert np.all(np.isfinite(fp))
    assert np.all(np.abs(fp) <= (GRID + 1) * IMG_SCALING + 1e-5)   # inside the scaled grid
    print("KERNEL_OK")
</pallas_src>

<mosaic_0001>
module attributes {stable_mosaic.version = 11 : i64} {
  func.func @goal_global_kernel(%arg0: memref<1xf32, #tpu.memory_space<smem>>, %arg1: memref<36x512xf32, #tpu.memory_space<vmem>>, %arg2: memref<4x36xf32, #tpu.memory_space<vmem>>, %arg3: memref<4x1xf32, #tpu.memory_space<vmem>>, %arg4: memref<4x1xf32, #tpu.memory_space<vmem>>, %arg5: memref<32x32xf32, #tpu.memory_space<vmem>>, %arg6: memref<1x32xf32, #tpu.memory_space<vmem>>, %arg7: memref<32x64xf32, #tpu.memory_space<vmem>>, %arg8: memref<1x64xf32, #tpu.memory_space<vmem>>, %arg9: memref<64x384xbf16, #tpu.memory_space<vmem>>, %arg10: memref<256x384xbf16, #tpu.memory_space<vmem>>, %arg11: memref<2x384xf32, #tpu.memory_space<vmem>>, %arg12: memref<6x384xf32, #tpu.memory_space<vmem>>, %arg13: memref<2x32xf32, #tpu.memory_space<vmem>>, %arg14: memref<8x384xf32, #tpu.memory_space<vmem>>) attributes {dimension_semantics = [], scalar_prefetch = 0 : i64, scratch_operands = 0 : i64, tpu.core_type = #tpu.core_type<tc>} {
    %c0 = arith.constant 0 : index
    %c0_0 = arith.constant 0 : index
    %0 = vector.load %arg2[%c0, %c0_0] : memref<4x36xf32, #tpu.memory_space<vmem>>, vector<4x36xf32>
    %c0_1 = arith.constant 0 : index
    %c0_2 = arith.constant 0 : index
    %1 = vector.load %arg1[%c0_1, %c0_2] : memref<36x512xf32, #tpu.memory_space<vmem>>, vector<36x512xf32>
    %cst = arith.constant dense<0.000000e+00> : vector<4x512xf32>
    %2 = tpu.matmul %0, %1, %cst {dimension_numbers = #tpu.dot_dimension_numbers<[1], [0], [0], [1], [0, 0, 1, 1], [], []>} : vector<4x36xf32>, vector<36x512xf32>, vector<4x512xf32> -> vector<4x512xf32>
    %cst_3 = arith.constant dense<0.000000e+00> : vector<4xf32>
    %3 = vector.multi_reduction <add>, %2, %cst_3 [1] : vector<4x512xf32> to vector<4xf32>
    %4 = vector.shape_cast %3 : vector<4xf32> to vector<4x1xf32>
    %cst_4 = arith.constant 5.120000e+02 : f32
    %5 = vector.broadcast %cst_4 : f32 to vector<4x1xf32>
    %6 = arith.divf %4, %5 : vector<4x1xf32>
    %7 = arith.mulf %2, %2 : vector<4x512xf32>
    %cst_5 = arith.constant dense<0.000000e+00> : vector<4xf32>
    %8 = vector.multi_reduction <add>, %7, %cst_5 [1] : vector<4x512xf32> to vector<4xf32>
    %9 = vector.shape_cast %8 : vector<4xf32> to vector<4x1xf32>
    %cst_6 = arith.constant 5.120000e+02 : f32
    %10 = vector.broadcast %cst_6 : f32 to vector<4x1xf32>
    %11 = arith.divf %9, %10 : vector<4x1xf32>
    %12 = arith.mulf %6, %6 : vector<4x1xf32>
    %13 = arith.subf %11, %12 : vector<4x1xf32>
    %c0_7 = arith.constant 0 : index
    %c0_8 = arith.constant 0 : index
    %14 = vector.load %arg3[%c0_7, %c0_8] : memref<4x1xf32, #tpu.memory_space<vmem>>, vector<4x1xf32>
    %cst_9 = arith.constant 9.99999974E-6 : f32
    %15 = vector.broadcast %cst_9 : f32 to vector<4x1xf32>
    %16 = arith.addf %13, %15 : vector<4x1xf32>
    %17 = math.rsqrt %16 : vector<4x1xf32>
    %18 = arith.mulf %14, %17 : vector<4x1xf32>
    %c0_10 = arith.constant 0 : index
    %c0_11 = arith.constant 0 : index
    %19 = vector.load %arg4[%c0_10, %c0_11] : memref<4x1xf32, #tpu.memory_space<vmem>>, vector<4x1xf32>
    %20 = arith.mulf %6, %18 : vector<4x1xf32>
    %21 = arith.subf %19, %20 : vector<4x1xf32>
    %22 = vector.broadcast %18 : vector<4x1xf32> to vector<4x512xf32>
    %23 = arith.mulf %2, %22 : vector<4x512xf32>
    %24 = vector.broadcast %21 : vector<4x1xf32> to vector<4x512xf32>
    %25 = arith.addf %23, %24 : vector<4x512xf32>
    %cst_12 = arith.constant 0.000000e+00 : f32
    %26 = vector.broadcast %cst_12 : f32 to vector<4x512xf32>
    %27 = arith.maximumf %25, %26 : vector<4x512xf32>
    %28 = vector.extract_strided_slice %27 {offsets = [0, 0], sizes = [4, 128], strides = [1, 1]} : vector<4x512xf32> to vector<4x128xf32>
    %29 = vector.extract_strided_slice %27 {offsets = [0, 128], sizes = [4, 128], strides = [1, 1]} : vector<4x512xf32> to vector<4x128xf32>
    %30 = arith.maximumf %28, %29 : vector<4x128xf32>
    %31 = vector.extract_strided_slice %27 {offsets = [0, 256], sizes = [4, 128], strides = [1, 1]} : vector<4x512xf32> to vector<4x128xf32>
    %32 = vector.extract_strided_slice %27 {offsets = [0, 384], sizes = [4, 128], strides = [1, 1]} : vector<4x512xf32> to vector<4x128xf32>
    %33 = arith.maximumf %31, %32 : vector<4x128xf32>
    %34 = arith.maximumf %30, %33 : vector<4x128xf32>
    %35 = vector.extract_strided_slice %34 {offsets = [0, 0], sizes = [1, 64], strides = [1, 1]} : vector<4x128xf32> to vector<1x64xf32>
    %36 = vector.extract_strided_slice %34 {offsets = [1, 0], sizes = [1, 64], strides = [1, 1]} : vector<4x128xf32> to vector<1x64xf32>
    %37 = vector.extract_strided_slice %34 {offsets = [2, 0], sizes = [1, 64], strides = [1, 1]} : vector<4x128xf32> to vector<1x64xf32>
    %38 = vector.extract_strided_slice %34 {offsets = [3, 0], sizes = [1, 64], strides = [1, 1]} : vector<4x128xf32> to vector<1x64xf32>
    %39 = tpu.concatenate %35, %36, %37, %38 in 1 : vector<1x64xf32>, vector<1x64xf32>, vector<1x64xf32>, vector<1x64xf32> -> vector<1x256xf32>
    %40 = vector.extract_strided_slice %34 {offsets = [0, 64], sizes = [1, 64], strides = [1, 1]} : vector<4x128xf32> to vector<1x64xf32>
    %41 = vector.extract_strided_slice %34 {offsets = [1, 64], sizes = [1, 64], strides = [1, 1]} : vector<4x128xf32> to vector<1x64xf32>
    %42 = vector.extract_strided_slice %34 {offsets = [2, 64], sizes = [1, 64], strides = [1, 1]} : vector<4x128xf32> to vector<1x64xf32>
    %43 = vector.extract_strided_slice %34 {offsets = [3, 64], sizes = [1, 64], strides = [1, 1]} : vector<4x128xf32> to vector<1x64xf32>
    %44 = tpu.concatenate %40, %41, %42, %43 in 1 : vector<1x64xf32>, vector<1x64xf32>, vector<1x64xf32>, vector<1x64xf32> -> vector<1x256xf32>
    %45 = tpu.concatenate %39, %44 in 0 : vector<1x256xf32>, vector<1x256xf32> -> vector<2x256xf32>
    %c0_13 = arith.constant 0 : index
    %c0_14 = arith.constant 0 : index
    %46 = vector.load %arg13[%c0_13, %c0_14] : memref<2x32xf32, #tpu.memory_space<vmem>>, vector<2x32xf32>
    %c0_15 = arith.constant 0 : index
    %c0_16 = arith.constant 0 : index
    %47 = vector.load %arg5[%c0_15, %c0_16] : memref<32x32xf32, #tpu.memory_space<vmem>>, vector<32x32xf32>
    %cst_17 = arith.constant dense<0.000000e+00> : vector<2x32xf32>
    %48 = tpu.matmul %46, %47, %cst_17 {dimension_numbers = #tpu.dot_dimension_numbers<[1], [0], [0], [1], [0, 0, 1, 1], [], []>} : vector<2x32xf32>, vector<32x32xf32>, vector<2x32xf32> -> vector<2x32xf32>
    %c0_18 = arith.constant 0 : index
    %c0_19 = arith.constant 0 : index
    %49 = vector.load %arg6[%c0_18, %c0_19] : memref<1x32xf32, #tpu.memory_space<vmem>>, vector<1x32xf32>
    %50 = vector.broadcast %49 : vector<1x32xf32> to vector<2x32xf32>
    %51 = arith.addf %48, %50 : vector<2x32xf32>
    %52 = math.tanh %51 : vector<2x32xf32>
    %c0_20 = arith.constant 0 : index
    %c0_21 = arith.constant 0 : index
    %53 = vector.load %arg7[%c0_20, %c0_21] : memref<32x64xf32, #tpu.memory_space<vmem>>, vector<32x64xf32>
    %cst_22 = arith.constant dense<0.000000e+00> : vector<2x64xf32>
    %54 = tpu.matmul %52, %53, %cst_22 {dimension_numbers = #tpu.dot_dimension_numbers<[1], [0], [0], [1], [0, 0, 1, 1], [], []>} : vector<2x32xf32>, vector<32x64xf32>, vector<2x64xf32> -> vector<2x64xf32>
    %c0_23 = arith.constant 0 : index
    %c0_24 = arith.constant 0 : index
    %55 = vector.load %arg8[%c0_23, %c0_24] : memref<1x64xf32, #tpu.memory_space<vmem>>, vector<1x64xf32>
    %56 = vector.broadcast %55 : vector<1x64xf32> to vector<2x64xf32>
    %57 = arith.addf %54, %56 : vector<2x64xf32>
    %58 = math.tanh %57 : vector<2x64xf32>
    %59 = arith.truncf %58 : vector<2x64xf32> to vector<2x64xbf16>
    %c0_25 = arith.constant 0 : index
    %c0_26 = arith.constant 0 : index
    %60 = vector.load %arg9[%c0_25, %c0_26] : memref<64x384xbf16, #tpu.memory_space<vmem>>, vector<64x384xbf16>
    %cst_27 = arith.constant dense<0.000000e+00> : vector<2x384xf32>
    %61 = tpu.matmul %59, %60, %cst_27 {dimension_numbers = #tpu.dot_dimension_numbers<[1], [0], [0], [1], [0, 0, 1, 1], [], []>} : vector<2x64xbf16>, vector<64x384xbf16>, vector<2x384xf32> -> vector<2x384xf32>
    %62 = arith.truncf %45 : vector<2x256xf32> to vector<2x256xbf16>
    %c0_28 = arith.constant 0 : index
    %c0_29 = arith.constant 0 : index
    %63 = vector.load %arg10[%c0_28, %c0_29] : memref<256x384xbf16, #tpu.memory_space<vmem>>, vector<256x384xbf16>
    %cst_30 = arith.constant dense<0.000000e+00> : vector<2x384xf32>
    %64 = tpu.matmul %62, %63, %cst_30 {dimension_numbers = #tpu.dot_dimension_numbers<[1], [0], [0], [1], [0, 0, 1, 1], [], []>} : vector<2x256xbf16>, vector<256x384xbf16>, vector<2x384xf32> -> vector<2x384xf32>
    %65 = arith.addf %61, %64 : vector<2x384xf32>
    %c0_31 = arith.constant 0 : index
    %66 = memref.load %arg0[%c0_31] : memref<1xf32, #tpu.memory_space<smem>>
    %67 = vector.broadcast %66 : f32 to vector<2x384xf32>
    %68 = arith.addf %65, %67 : vector<2x384xf32>
    %69 = tpu.iota {dimensions = array<i32: 1>} : vector<2x384xi32>
    %c289_i32 = arith.constant 289 : i32
    %70 = vector.broadcast %c289_i32 : i32 to vector<2x384xi32>
    %71 = arith.cmpi slt, %69, %70 : vector<2x384xi32>
    %cst_32 = arith.constant -1.000000e+30 : f32
    %72 = vector.broadcast %cst_32 : f32 to vector<2x384xf32>
    %73 = arith.select %71, %68, %72 : vector<2x384xi1>, vector<2x384xf32>
    %c0_33 = arith.constant 0 : index
    %c0_34 = arith.constant 0 : index
    %74 = vector.load %arg12[%c0_33, %c0_34] : memref<6x384xf32, #tpu.memory_space<vmem>>, vector<6x384xf32>
    %75 = vector.extract_strided_slice %74 {offsets = [0, 0], sizes = [2, 384], strides = [1, 1]} : vector<6x384xf32> to vector<2x384xf32>
    %cst_35 = arith.constant 1.000000e-10 : f32
    %76 = vector.broadcast %cst_35 : f32 to vector<2x384xf32>
    %77 = arith.addf %75, %76 : vector<2x384xf32>
    %78 = math.log %77 : vector<2x384xf32>
    %cst_36 = arith.constant 1.000000e-10 : f32
    %79 = vector.broadcast %cst_36 : f32 to vector<2x384xf32>
    %80 = arith.subf %79, %78 : vector<2x384xf32>
    %81 = math.log %80 : vector<2x384xf32>
    %cst_37 = arith.constant 0.000000e+00 : f32
    %82 = vector.broadcast %cst_37 : f32 to vector<2x384xf32>
    %83 = arith.subf %82, %81 : vector<2x384xf32>
    %84 = arith.addf %73, %83 : vector<2x384xf32>
    %cst_38 = arith.constant 1.000000e+00 : f32
    %85 = vector.broadcast %cst_38 : f32 to vector<2x384xf32>
    %86 = arith.mulf %84, %85 : vector<2x384xf32>
    %87 = tpu.concatenate %86, %73 in 0 : vector<2x384xf32>, vector<2x384xf32> -> vector<4x384xf32>
    %cst_39 = arith.constant dense<0xFF800000> : vector<4xf32>
    %88 = vector.multi_reduction <maximumf>, %87, %cst_39 [1] : vector<4x384xf32> to vector<4xf32>
    %89 = vector.shape_cast %88 : vector<4xf32> to vector<4x1xf32>
    %90 = vector.broadcast %89 : vector<4x1xf32> to vector<4x384xf32>
    %91 = arith.subf %87, %90 : vector<4x384xf32>
    %92 = math.exp %91 : vector<4x384xf32>
    %cst_40 = arith.constant dense<0.000000e+00> : vector<4xf32>
    %93 = vector.multi_reduction <add>, %92, %cst_40 [1] : vector<4x384xf32> to vector<4xf32>
    %94 = vector.shape_cast %93 : vector<4xf32> to vector<4x1xf32>
    %95 = vector.broadcast %94 : vector<4x1xf32> to vector<4x384xf32>
    %96 = arith.divf %92, %95 : vector<4x384xf32>
    %97 = vector.extract_strided_slice %96 {offsets = [0, 0], sizes = [2, 384], strides = [1, 1]} : vector<4x384xf32> to vector<2x384xf32>
    %98 = vector.extract_strided_slice %96 {offsets = [2, 0], sizes = [2, 384], strides = [1, 1]} : vector<4x384xf32> to vector<2x384xf32>
    %cst_41 = arith.constant dense<0xFF800000> : vector<2xf32>
    %99 = vector.multi_reduction <maximumf>, %97, %cst_41 [1] : vector<2x384xf32> to vector<2xf32>
    %100 = vector.shape_cast %99 : vector<2xf32> to vector<2x1xf32>
    %101 = vector.broadcast %100 : vector<2x1xf32> to vector<2x384xf32>
    %102 = arith.cmpf oeq, %97, %101 : vector<2x384xf32>
    %c384_i32 = arith.constant 384 : i32
    %103 = vector.broadcast %c384_i32 : i32 to vector<2x384xi32>
    %104 = arith.select %102, %69, %103 : vector<2x384xi1>, vector<2x384xi32>
    %cst_42 = arith.constant dense<2147483647> : vector<2xi32>
    %105 = vector.multi_reduction <minsi>, %104, %cst_42 [1] : vector<2x384xi32> to vector<2xi32>
    %106 = vector.shape_cast %105 : vector<2xi32> to vector<2x1xi32>
    %107 = vector.broadcast %106 : vector<2x1xi32> to vector<2x384xi32>
    %108 = arith.cmpi eq, %69, %107 : vector<2x384xi32>
    %109 = arith.extui %108 : vector<2x384xi1> to vector<2x384xi32>
    %110 = arith.sitofp %109 : vector<2x384xi32> to vector<2x384xf32>
    %c0_43 = arith.constant 0 : index
    %c0_44 = arith.constant 0 : index
    %111 = vector.load %arg11[%c0_43, %c0_44] : memref<2x384xf32, #tpu.memory_space<vmem>>, vector<1x384xf32>
    %112 = vector.extract_strided_slice %74 {offsets = [2, 0], sizes = [2, 384], strides = [1, 1]} : vector<6x384xf32> to vector<2x384xf32>
    %113 = vector.broadcast %111 : vector<1x384xf32> to vector<2x384xf32>
    %114 = arith.addf %113, %112 : vector<2x384xf32>
    %c1 = arith.constant 1 : index
    %c0_45 = arith.constant 0 : index
    %115 = vector.load %arg11[%c1, %c0_45] : memref<2x384xf32, #tpu.memory_space<vmem>>, vector<1x384xf32>
    %116 = vector.extract_strided_slice %74 {offsets = [4, 0], sizes = [2, 384], strides = [1, 1]} : vector<6x384xf32> to vector<2x384xf32>
    %117 = vector.broadcast %115 : vector<1x384xf32> to vector<2x384xf32>
    %118 = arith.addf %117, %116 : vector<2x384xf32>
    %119 = arith.mulf %114, %110 : vector<2x384xf32>
    %cst_46 = arith.constant dense<0.000000e+00> : vector<2xf32>
    %120 = vector.multi_reduction <add>, %119, %cst_46 [1] : vector<2x384xf32> to vector<2xf32>
    %121 = vector.shape_cast %120 : vector<2xf32> to vector<2x1xf32>
    %cst_47 = arith.constant 2.500000e-01 : f32
    %122 = vector.broadcast %cst_47 : f32 to vector<2x1xf32>
    %123 = arith.mulf %121, %122 : vector<2x1xf32>
    %124 = arith.mulf %118, %110 : vector<2x384xf32>
    %cst_48 = arith.constant dense<0.000000e+00> : vector<2xf32>
    %125 = vector.multi_reduction <add>, %124, %cst_48 [1] : vector<2x384xf32> to vector<2xf32>
    %126 = vector.shape_cast %125 : vector<2xf32> to vector<2x1xf32>
    %cst_49 = arith.constant 2.500000e-01 : f32
    %127 = vector.broadcast %cst_49 : f32 to vector<2x1xf32>
    %128 = arith.mulf %126, %127 : vector<2x1xf32>
    %c289_i32_50 = arith.constant 289 : i32
    %129 = vector.broadcast %c289_i32_50 : i32 to vector<2x384xi32>
    %130 = arith.cmpi eq, %69, %129 : vector<2x384xi32>
    %c290_i32 = arith.constant 290 : i32
    %131 = vector.broadcast %c290_i32 : i32 to vector<2x384xi32>
    %132 = arith.cmpi eq, %69, %131 : vector<2x384xi32>
    %133 = vector.shape_cast %128 : vector<2x1xf32> to vector<2x1xf32>
    %134 = vector.broadcast %133 : vector<2x1xf32> to vector<2x384xf32>
    %135 = arith.select %132, %134, %73 : vector<2x384xi1>, vector<2x384xf32>
    %136 = vector.shape_cast %123 : vector<2x1xf32> to vector<2x1xf32>
    %137 = vector.broadcast %136 : vector<2x1xf32> to vector<2x384xf32>
    %138 = arith.select %130, %137, %135 : vector<2x384xi1>, vector<2x384xf32>
    %c0_51 = arith.constant 0 : index
    %c0_52 = arith.constant 0 : index
    %139 = vector.load %arg14[%c0_51, %c0_52] : memref<8x384xf32, #tpu.memory_space<vmem>>, vector<2x384xf32>
    tpu.vector_store %arg14[%c0_51, %c0_52], %138 {strides = array<i32>} : memref<8x384xf32, #tpu.memory_space<vmem>>, vector<2x384xf32>,
    %c2 = arith.constant 2 : index
    %c0_53 = arith.constant 0 : index
    %140 = vector.load %arg14[%c2, %c0_53] : memref<8x384xf32, #tpu.memory_space<vmem>>, vector<2x384xf32>
    tpu.vector_store %arg14[%c2, %c0_53], %110 {strides = array<i32>} : memref<8x384xf32, #tpu.memory_space<vmem>>, vector<2x384xf32>,
    %cst_54 = arith.constant 1.000000e-10 : f32
    %141 = vector.broadcast %cst_54 : f32 to vector<2x384xf32>
    %142 = arith.maximumf %97, %141 : vector<2x384xf32>
    %c4 = arith.constant 4 : index
    %c0_55 = arith.constant 0 : index
    %143 = vector.load %arg14[%c4, %c0_55] : memref<8x384xf32, #tpu.memory_space<vmem>>, vector<2x384xf32>
    tpu.vector_store %arg14[%c4, %c0_55], %142 {strides = array<i32>} : memref<8x384xf32, #tpu.memory_space<vmem>>, vector<2x384xf32>,
    %c6 = arith.constant 6 : index
    %c0_56 = arith.constant 0 : index
    %144 = vector.load %arg14[%c6, %c0_56] : memref<8x384xf32, #tpu.memory_space<vmem>>, vector<2x384xf32>
    tpu.vector_store %arg14[%c6, %c0_56], %98 {strides = array<i32>} : memref<8x384xf32, #tpu.memory_space<vmem>>, vector<2x384xf32>,
    return
  }
}

</mosaic_0001>

<llo_original>
// kernel: goal_global_forward.1
$region0: #{goal_global_forward.1}
  #allocation0 [shape = 'u32[]', space=smem, size = 0x4, offset = 0x4, fixed_abs, tag = 'smem constant byte address 0x4 - core index']
  #allocation1 [shape = 'u32[144,128]{1,0:T(1,128)}', space=vmem, size = 0x12000, scoped, tag = 'internal scratch']
  #allocation2 [shape = 'f32[1]{0:T(128)S(6)}', space=smem, size = 0x200, scoped, tag = 'scoped memory for goal_global_forward.1']
  %s0 = inlined_call_operand.<no memory space> [shape: f32[1], index: 0, kind: input, shape index: {}]
  %s1 = inlined_call_operand.vmem [shape: f32[36,512], index: 1, kind: input, shape index: {}]
  %s2 = inlined_call_operand.vmem [shape: f32[4,36], index: 2, kind: input, shape index: {}]
  %s3 = inlined_call_operand.vmem [shape: f32[4,1], index: 3, kind: input, shape index: {}]
  %s4 = inlined_call_operand.vmem [shape: f32[4,1], index: 4, kind: input, shape index: {}]
  %s5 = inlined_call_operand.vmem [shape: f32[32,32], index: 5, kind: input, shape index: {}]
  %s6 = inlined_call_operand.vmem [shape: f32[1,32], index: 6, kind: input, shape index: {}]
  %s7 = inlined_call_operand.vmem [shape: f32[32,64], index: 7, kind: input, shape index: {}]
  %s8 = inlined_call_operand.vmem [shape: f32[1,64], index: 8, kind: input, shape index: {}]
  %s9 = inlined_call_operand.vmem [shape: bf16[64,384], index: 9, kind: input, shape index: {}]
  %s10 = inlined_call_operand.vmem [shape: bf16[256,384], index: 10, kind: input, shape index: {}]
  %s11 = inlined_call_operand.vmem [shape: f32[2,384], index: 11, kind: input, shape index: {}]
  %s12 = inlined_call_operand.vmem [shape: f32[6,384], index: 12, kind: input, shape index: {}]
  %s13 = inlined_call_operand.vmem [shape: f32[2,32], index: 13, kind: input, shape index: {}]
  %s14 = inlined_call_operand.vmem [shape: f32[8,384], index: 14, kind: output, shape index: {}]
  %s15 = sld [smem:[#allocation0]]
  $region66: #{goal_global_forward.1} parent=0
    _
  %s17 = ssub.s32 1, %s15
  %s18 = scalar_select 0, %s17, %s15
  %19 = sst [smem:[#allocation2]] %s0
  // Predicated region
  $region2: #{goal_global_forward.1} parent=0 // pred_check
    _
  $region3: #{goal_global_forward.1} parent=0 // pred_check_branch
    %21 = sbr.rel (0) target = $region5
  $region4: #{goal_global_forward.1} parent=0 // pred_region
    _
  $region5: #{goal_global_forward.1} parent=0 // pred_fallthru
    _
  // Predicated region
  $region6: #{goal_global_forward.1} parent=0 // pred_check
    _
  $region7: #{goal_global_forward.1} parent=0 // pred_check_branch
    %23 = sbr.rel (0) target = $region9
  $region8: #{goal_global_forward.1} parent=0 // pred_region
    _
  $region9: #{goal_global_forward.1} parent=0 // pred_fallthru
    _
  // Predicated region
  $region10: #{goal_global_forward.1} parent=0 // pred_check
    _
  $region11: #{goal_global_forward.1} parent=0 // pred_check_branch
    %25 = sbr.rel (0) target = $region13
  $region12: #{goal_global_forward.1} parent=0 // pred_region
    _
  $region13: #{goal_global_forward.1} parent=0 // pred_fallthru
    _
  // Predicated region
  $region14: #{goal_global_forward.1} parent=0 // pred_check
    _
  $region15: #{goal_global_forward.1} parent=0 // pred_check_branch
    %27 = sbr.rel (0) target = $region17
  $region16: #{goal_global_forward.1} parent=0 // pred_region
    _
  $region17: #{goal_global_forward.1} parent=0 // pred_fallthru
    _
  // Predicated region
  $region18: #{goal_global_forward.1} parent=0 // pred_check
    _
  $region19: #{goal_global_forward.1} parent=0 // pred_check_branch
    %29 = sbr.rel (0) target = $region21
  $region20: #{goal_global_forward.1} parent=0 // pred_region
    _
  $region21: #{goal_global_forward.1} parent=0 // pred_fallthru
    _
  // Predicated region
  $region22: #{goal_global_forward.1} parent=0 // pred_check
    _
  $region23: #{goal_global_forward.1} parent=0 // pred_check_branch
    %31 = sbr.rel (0) target = $region25
  $region24: #{goal_global_forward.1} parent=0 // pred_region
    _
  $region25: #{goal_global_forward.1} parent=0 // pred_fallthru
    _
  // Predicated region
  $region26: #{goal_global_forward.1} parent=0 // pred_check
    _
  $region27: #{goal_global_forward.1} parent=0 // pred_check_branch
    %33 = sbr.rel (0) target = $region29
  $region28: #{goal_global_forward.1} parent=0 // pred_region
    _
  $region29: #{goal_global_forward.1} parent=0 // pred_fallthru
    _
  // Predicated region
  $region30: #{goal_global_forward.1} parent=0 // pred_check
    _
  $region31: #{goal_global_forward.1} parent=0 // pred_check_branch
    %35 = sbr.rel (0) target = $region33
  $region32: #{goal_global_forward.1} parent=0 // pred_region
    _
  $region33: #{goal_global_forward.1} parent=0 // pred_fallthru
    _
  // Predicated region
  $region34: #{goal_global_forward.1} parent=0 // pred_check
    _
  $region35: #{goal_global_forward.1} parent=0 // pred_check_branch
    %37 = sbr.rel (0) target = $region37
  $region36: #{goal_global_forward.1} parent=0 // pred_region
    _
  $region37: #{goal_global_forward.1} parent=0 // pred_fallthru
    _
  // Predicated region
  $region38: #{goal_global_forward.1} parent=0 // pred_check
    _
  $region39: #{goal_global_forward.1} parent=0 // pred_check_branch
    %39 = sbr.rel (0) target = $region41
  $region40: #{goal_global_forward.1} parent=0 // pred_region
    _
  $region41: #{goal_global_forward.1} parent=0 // pred_fallthru
    _
  // Predicated region
  $region42: #{goal_global_forward.1} parent=0 // pred_check
    _
  $region43: #{goal_global_forward.1} parent=0 // pred_check_branch
    %41 = sbr.rel (0) target = $region45
  $region44: #{goal_global_forward.1} parent=0 // pred_region
    _
  $region45: #{goal_global_forward.1} parent=0 // pred_fallthru
    _
  // Predicated region
  $region46: #{goal_global_forward.1} parent=0 // pred_check
    _
  $region47: #{goal_global_forward.1} parent=0 // pred_check_branch
    %43 = sbr.rel (0) target = $region49
  $region48: #{goal_global_forward.1} parent=0 // pred_region
    _
  $region49: #{goal_global_forward.1} parent=0 // pred_fallthru
    _
  // Predicated region
  $region50: #{goal_global_forward.1} parent=0 // pred_check
    _
  $region51: #{goal_global_forward.1} parent=0 // pred_check_branch
    %45 = sbr.rel (0) target = $region53
  $region52: #{goal_global_forward.1} parent=0 // pred_region
    _
  $region53: #{goal_global_forward.1} parent=0 // pred_fallthru
    _
  // Predicated region
  $region54: #{goal_global_forward.1} parent=0 // pred_check
    _
  $region55: #{goal_global_forward.1} parent=0 // pred_check_branch
    %47 = sbr.rel (0) target = $region57
  $region56: #{goal_global_forward.1} parent=0 // pred_region
    _
  $region57: #{goal_global_forward.1} parent=0 // pred_fallthru
    _
  %v49 = vld [vmem:[%s2] sm:$0xf]
  %v50 = vld [vmem:[%s1] sm:$0xff]
  %v51 = vld [vmem:[%s1 + $0x8] sm:$0xff]
  %v52 = vld [vmem:[%s1 + $0x10] sm:$0xff]
  %v53 = vld [vmem:[%s1 + $0x18] sm:$0xff]
  %v54 = vld [vmem:[%s1 + $0x20] sm:$0xff]
  %v55 = vld [vmem:[%s1 + $0x28] sm:$0xff]
  %v56 = vld [vmem:[%s1 + $0x30] sm:$0xff]
  %v57 = vld [vmem:[%s1 + $0x38] sm:$0xff]
  %v58 = vld [vmem:[%s1 + $0x40] sm:$0xff]
  %v59 = vld [vmem:[%s1 + $0x48] sm:$0xff]
  %v60 = vld [vmem:[%s1 + $0x50] sm:$0xff]
  %v61 = vld [vmem:[%s1 + $0x58] sm:$0xff]
  %v62 = vld [vmem:[%s1 + $0x60] sm:$0xff]
  %v63 = vld [vmem:[%s1 + $0x68] sm:$0xff]
  %v64 = vld [vmem:[%s1 + $0x70] sm:$0xff]
  %v65 = vld [vmem:[%s1 + $0x78] sm:$0xff]
  %v66 = vld [vmem:[%s1 + $0x80] sm:$0xf]
  %v67 = vld [vmem:[%s1 + $0x88] sm:$0xf]
  %v68 = vld [vmem:[%s1 + $0x90] sm:$0xf]
  %v69 = vld [vmem:[%s1 + $0x98] sm:$0xf]
  %vm70 = vcmask 293888
  %v72 = vsel %vm70, %v49, 0
  %vm74 = vcmask 1043456
  %v76 = vsel %vm74, %v66, 0
  %v79 = vsel %vm74, %v67, 0
  %v82 = vsel %vm74, %v68, 0
  %v85 = vsel %vm74, %v69, 0
  %87 = vmatprep.subr.mxu0 0.0
  %88 = vmatpush1.msra.mxu0 0.0
  %89 = vmatprep.subr.mxu0 0.0
  %90 = vmatpush1.msra.mxu0 0.0
  %91 = vmatprep.subr.mxu0 0.0
  %92 = vmatpush1.msra.mxu0 0.0
  %93 = vmatprep.subr.mxu0 0.0
  %94 = vmatpush1.msra.mxu0 0.0
  %95 = vmatprep.subr.mxu0 0.0
  %96 = vmatpush1.msra.mxu0 0.0
  %97 = vmatprep.subr.mxu0 0.0
  %98 = vmatpush1.msra.mxu0 0.0
  %99 = vmatprep.subr.mxu0 0.0
  %100 = vmatpush1.msra.mxu0 0.0
  %101 = vmatprep.subr.mxu0 0.0
  %102 = vmatpush1.msra.mxu0 0.0
  %103 = vmatprep.subr.mxu0 0.0
  %104 = vmatpush1.msra.mxu0 0.0
  %105 = vmatprep.subr.mxu0 0.0
  %106 = vmatpush1.msra.mxu0 0.0
  %107 = vmatprep.subr.mxu0 0.0
  %108 = vmatpush1.msra.mxu0 0.0
  %109 = vmatprep.subr.mxu0 %v79
  %110 = vmatpush1.msra.mxu0 %v76
  %111 = vmatprep.subr.mxu0 %v63
  %112 = vmatpush1.msra.mxu0 %v62
  %113 = vmatprep.subr.mxu0 %v59
  %114 = vmatpush1.msra.mxu0 %v58
  %115 = vmatprep.subr.mxu0 %v55
  %116 = vmatpush1.msra.mxu0 %v54
  %117 = vmatprep.subr.mxu0 %v51
  %118 = vmatpush1.msra.mxu0 %v50
  %119 = vmatprep.subr.mxu0 0.0
  %120 = vmatpush2.msra.mxu0 0.0
  %121 = vmatprep.subr.mxu0 0.0
  %122 = vmatpush2.msra.mxu0 0.0
  %123 = vmatprep.subr.mxu0 0.0
  %124 = vmatpush2.msra.mxu0 0.0
  %125 = vmatprep.subr.mxu0 0.0
  %126 = vmatpush2.msra.mxu0 0.0
  %127 = vmatprep.subr.mxu0 0.0
  %128 = vmatpush2.msra.mxu0 0.0
  %129 = vmatprep.subr.mxu0 0.0
  %130 = vmatpush2.msra.mxu0 0.0
  %131 = vmatprep.subr.mxu0 0.0
  %132 = vmatpush2.msra.mxu0 0.0
  %133 = vmatprep.subr.mxu0 0.0
  %134 = vmatpush2.msra.mxu0 0.0
  %135 = vmatprep.subr.mxu0 0.0
  %136 = vmatpush2.msra.mxu0 0.0
  %137 = vmatprep.subr.mxu0 0.0
  %138 = vmatpush2.msra.mxu0 0.0
  %139 = vmatprep.subr.mxu0 0.0
  %140 = vmatpush2.msra.mxu0 0.0
  %141 = vmatprep.subr.mxu0 0.0
  %142 = vmatpush2.msra.mxu0 0.0
  %143 = vmatprep.subr.mxu0 0.0
  %144 = vmatpush2.msra.mxu0 0.0
  %145 = vmatprep.subr.mxu0 0.0
  %146 = vmatpush2.msra.mxu0 0.0
  %147 = vmatprep.subr.mxu0 0.0
  %148 = vmatpush2.msra.mxu0 0.0
  %149 = vmatprep.subr.mxu0 0.0
  %150 = vmatpush2.msra.mxu0 0.0
  %151 = vmatprep.mubr.f32.mxu0 0.0
  %152 = vmatmul.mubr.f32.gmra.mxu0 %v72
  %v153 = vpop.f32.mrf.mxu0
  %v154 = vadd.f32 0.0, %v153
  %v155 = vpop.f32.mrf.mxu0
  %v156 = vadd.f32 0.0, %v155
  %157 = vdwg.mxu0
  %158 = vmatprep.subr.mxu0 0.0
  %159 = vmatpush1.msra.mxu0 0.0
  %160 = vmatprep.subr.mxu0 0.0
  %161 = vmatpush1.msra.mxu0 0.0
  %162 = vmatprep.subr.mxu0 0.0
  %163 = vmatpush1.msra.mxu0 0.0
  %164 = vmatprep.subr.mxu0 0.0
  %165 = vmatpush1.msra.mxu0 0.0
  %166 = vmatprep.subr.mxu0 0.0
  %167 = vmatpush1.msra.mxu0 0.0
  %168 = vmatprep.subr.mxu0 0.0
  %169 = vmatpush1.msra.mxu0 0.0
  %170 = vmatprep.subr.mxu0 0.0
  %171 = vmatpush1.msra.mxu0 0.0
  %172 = vmatprep.subr.mxu0 0.0
  %173 = vmatpush1.msra.mxu0 0.0
  %174 = vmatprep.subr.mxu0 0.0
  %175 = vmatpush1.msra.mxu0 0.0
  %176 = vmatprep.subr.mxu0 0.0
  %177 = vmatpush1.msra.mxu0 0.0
  %178 = vmatprep.subr.mxu0 0.0
  %179 = vmatpush1.msra.mxu0 0.0
  %180 = vmatprep.subr.mxu0 %v85
  %181 = vmatpush1.msra.mxu0 %v82
  %182 = vmatprep.subr.mxu0 %v65
  %183 = vmatpush1.msra.mxu0 %v64
  %184 = vmatprep.subr.mxu0 %v61
  %185 = vmatpush1.msra.mxu0 %v60
  %186 = vmatprep.subr.mxu0 %v57
  %187 = vmatpush1.msra.mxu0 %v56
  %188 = vmatprep.subr.mxu0 %v53
  %189 = vmatpush1.msra.mxu0 %v52
  %190 = vmatprep.subr.mxu0 0.0
  %191 = vmatpush2.msra.mxu0 0.0
  %192 = vmatprep.subr.mxu0 0.0
  %193 = vmatpush2.msra.mxu0 0.0
  %194 = vmatprep.subr.mxu0 0.0
  %195 = vmatpush2.msra.mxu0 0.0
  %196 = vmatprep.subr.mxu0 0.0
  %197 = vmatpush2.msra.mxu0 0.0
  %198 = vmatprep.subr.mxu0 0.0
  %199 = vmatpush2.msra.mxu0 0.0
  %200 = vmatprep.subr.mxu0 0.0
  %201 = vmatpush2.msra.mxu0 0.0
  %202 = vmatprep.subr.mxu0 0.0
  %203 = vmatpush2.msra.mxu0 0.0
  %204 = vmatprep.subr.mxu0 0.0
  %205 = vmatpush2.msra.mxu0 0.0
  %206 = vmatprep.subr.mxu0 0.0
  %207 = vmatpush2.msra.mxu0 0.0
  %208 = vmatprep.subr.mxu0 0.0
  %209 = vmatpush2.msra.mxu0 0.0
  %210 = vmatprep.subr.mxu0 0.0
  %211 = vmatpush2.msra.mxu0 0.0
  %212 = vmatprep.subr.mxu0 0.0
  %213 = vmatpush2.msra.mxu0 0.0
  %214 = vmatprep.subr.mxu0 0.0
  %215 = vmatpush2.msra.mxu0 0.0
  %216 = vmatprep.subr.mxu0 0.0
  %217 = vmatpush2.msra.mxu0 0.0
  %218 = vmatprep.subr.mxu0 0.0
  %219 = vmatpush2.msra.mxu0 0.0
  %220 = vmatprep.subr.mxu0 0.0
  %221 = vmatpush2.msra.mxu0 0.0
  %222 = vmatprep.mubr.f32.mxu0 0.0
  %223 = vmatmul.mubr.f32.gmra.mxu0 %v72
  %v224 = vpop.f32.mrf.mxu0
  %v225 = vadd.f32 0.0, %v224
  %v226 = vpop.f32.mrf.mxu0
  %v227 = vadd.f32 0.0, %v226
  %228 = vdwg.mxu0
  %v229 = vsel %vm74, %v154, 0.0
  %v230 = vsel %vm74, %v156, 0.0
  %v231 = vadd.f32 %v229, %v230
  %v232 = vsel %vm74, %v225, 0.0
  %v233 = vadd.f32 %v231, %v232
  %v234 = vsel %vm74, %v227, 0.0
  %v235 = vadd.f32 %v233, %v234
  %236 = vadd.xlane.f32.xlu0 %v235
  %v237 = vpop.xlane.xlu0 %236
  %v238 = vrcp.pop 512.0
  %v239 = vmul.f32 %v237, %v238
  %v240 = vmul.f32 %v154, %v154
  %v241 = vmul.f32 %v156, %v156
  %v242 = vmul.f32 %v225, %v225
  %v243 = vmul.f32 %v227, %v227
  %v244 = vsel %vm74, %v240, 0.0
  %v245 = vsel %vm74, %v241, 0.0
  %v246 = vadd.f32 %v244, %v245
  %v247 = vsel %vm74, %v242, 0.0
  %v248 = vadd.f32 %v246, %v247
  %v249 = vsel %vm74, %v243, 0.0
  %v250 = vadd.f32 %v248, %v249
  %251 = vadd.xlane.f32.xlu0 %v250
  %v252 = vpop.xlane.xlu0 %251
  %v253 = vmul.f32 %v252, %v238
  %v254 = vmul.f32 %v239, %v239
  %v255 = vsub.f32 %v253, %v254
  %v256 = vld [vmem:[%s3] sm:$0xf]
  %v257 = vadd.f32 %v255, 1e-05
  %v258 = vrsqrt.pop %v257
  %v259 = vmul.f32 %v256, %v258
  %v260 = vld [vmem:[%s4] sm:$0xf]
  %v261 = vmul.f32 %v239, %v259
  %v262 = vsub.f32 %v260, %v261
  %264 = vset.pattern.permute.xlu0 0
  %265 = vperm.xlu0 %264, %v259
  %v266 = vpop.permute.xlu0 %265
  %v268 = vmul.f32 %v154, %v266
  %v269 = vmul.f32 %v156, %v266
  %v270 = vmul.f32 %v225, %v266
  %v271 = vmul.f32 %v227, %v266
  %273 = vset.pattern.permute.xlu0 0
  %274 = vperm.xlu0 %273, %v262
  %v275 = vpop.permute.xlu0 %274
  %v277 = vadd.f32 %v268, %v275
  %v278 = vadd.f32 %v269, %v275
  %v279 = vadd.f32 %v270, %v275
  %v280 = vadd.f32 %v271, %v275
  %v281 = vmax.f32 %v277, 0.0
  %v282 = vmax.f32 %v278, 0.0
  %v283 = vmax.f32 %v279, 0.0
  %v284 = vmax.f32 %v280, 0.0
  %v285 = vmax.f32 %v281, %v282
  %v286 = vmax.f32 %v283, %v284
  %v287 = vmax.f32 %v285, %v286
  %v289 = vrot.slane %v287, 1
  %290 = vrot.lane.b32.xlu0 %v289, 64
  %v291 = vpop.permute.xlu0 %290
  %v293 = vrot.slane %v287, 2
  %v295 = vrot.slane %v287, 3
  %296 = vrot.lane.b32.xlu0 %v295, 64
  %v297 = vpop.permute.xlu0 %296
  %vm299 = vcmask 523264
  %v300 = vsel %vm299, %v287, %v291
  %v301 = vsel %vm299, %v293, %v297
  %302 = vrot.lane.b32.xlu0 %v287, 64
  %v303 = vpop.permute.xlu0 %302
  %306 = vrot.lane.b32.xlu0 %v293, 64
  %v307 = vpop.permute.xlu0 %306
  %v310 = vsel %vm299, %v303, %v289
  %v311 = vsel %vm299, %v307, %v295
  %v314 = vrot.slane %v310, 7
  %v315 = vrot.slane %v311, 7
  %vm318 = vcmask 1040384
  %v319 = vsel %vm318, %v300, %v314
  %v320 = vsel %vm318, %v301, %v315
  %v321 = vld [vmem:[%s13] sm:$0x3]
  %v322 = vld [vmem:[%s5] sm:$0xff]
  %v323 = vld [vmem:[%s5 + $0x8] sm:$0xff]
  %v324 = vld [vmem:[%s5 + $0x10] sm:$0xff]
  %v325 = vld [vmem:[%s5 + $0x18] sm:$0xff]
  %v326 = vld [vmem:[%s6] sm:$0x1]
  %v328 = vlaneseq
  %v329 = vshrl.u32 %v328, 7
  %v330 = vsub.s32 0, %v329
  %v331 = vrot.slane %v326, %v330
  %vm333 = vcmask 261120
  %v335 = vsel %vm333, %v321, 0
  %337 = vmatprep.subr.mxu0 0.0
  %338 = vmatpush1.msra.mxu0 0.0
  %339 = vmatprep.subr.mxu0 0.0
  %340 = vmatpush1.msra.mxu0 0.0
  %341 = vmatprep.subr.mxu0 0.0
  %342 = vmatpush1.msra.mxu0 0.0
  %343 = vmatprep.subr.mxu0 0.0
  %344 = vmatpush1.msra.mxu0 0.0
  %345 = vmatprep.subr.mxu0 0.0
  %346 = vmatpush1.msra.mxu0 0.0
  %347 = vmatprep.subr.mxu0 0.0
  %348 = vmatpush1.msra.mxu0 0.0
  %349 = vmatprep.subr.mxu0 0.0
  %350 = vmatpush1.msra.mxu0 0.0
  %351 = vmatprep.subr.mxu0 0.0
  %352 = vmatpush1.msra.mxu0 0.0
  %353 = vmatprep.subr.mxu0 0.0
  %354 = vmatpush1.msra.mxu0 0.0
  %355 = vmatprep.subr.mxu0 0.0
  %356 = vmatpush1.msra.mxu0 0.0
  %357 = vmatprep.subr.mxu0 0.0
  %358 = vmatpush1.msra.mxu0 0.0
  %359 = vmatprep.subr.mxu0 0.0
  %360 = vmatpush1.msra.mxu0 0.0
  %361 = vmatprep.subr.mxu0 0.0
  %362 = vmatpush1.msra.mxu0 %v325
  %363 = vmatprep.subr.mxu0 0.0
  %364 = vmatpush1.msra.mxu0 %v324
  %365 = vmatprep.subr.mxu0 0.0
  %366 = vmatpush1.msra.mxu0 %v323
  %367 = vmatprep.subr.mxu0 0.0
  %368 = vmatpush1.msra.mxu0 %v322
  %369 = vmatprep.subr.mxu0 0.0
  %370 = vmatpush2.msra.mxu0 0.0
  %371 = vmatprep.subr.mxu0 0.0
  %372 = vmatpush2.msra.mxu0 0.0
  %373 = vmatprep.subr.mxu0 0.0
  %374 = vmatpush2.msra.mxu0 0.0
  %375 = vmatprep.subr.mxu0 0.0
  %376 = vmatpush2.msra.mxu0 0.0
  %377 = vmatprep.subr.mxu0 0.0
  %378 = vmatpush2.msra.mxu0 0.0
  %379 = vmatprep.subr.mxu0 0.0
  %380 = vmatpush2.msra.mxu0 0.0
  %381 = vmatprep.subr.mxu0 0.0
  %382 = vmatpush2.msra.mxu0 0.0
  %383 = vmatprep.subr.mxu0 0.0
  %384 = vmatpush2.msra.mxu0 0.0
  %385 = vmatprep.subr.mxu0 0.0
  %386 = vmatpush2.msra.mxu0 0.0
  %387 = vmatprep.subr.mxu0 0.0
  %388 = vmatpush2.msra.mxu0 0.0
  %389 = vmatprep.subr.mxu0 0.0
  %390 = vmatpush2.msra.mxu0 0.0
  %391 = vmatprep.subr.mxu0 0.0
  %392 = vmatpush2.msra.mxu0 0.0
  %393 = vmatprep.subr.mxu0 0.0
  %394 = vmatpush2.msra.mxu0 0.0
  %395 = vmatprep.subr.mxu0 0.0
  %396 = vmatpush2.msra.mxu0 0.0
  %397 = vmatprep.subr.mxu0 0.0
  %398 = vmatpush2.msra.mxu0 0.0
  %399 = vmatprep.subr.mxu0 0.0
  %400 = vmatpush2.msra.mxu0 0.0
  %401 = vmatprep.mubr.f32.mxu0 0.0
  %402 = vmatmul.mubr.f32.gmra.mxu0 %v335
  %v403 = vpop.f32.mrf.mxu0
  %v404 = vadd.f32 %v331, %v403
  %v405 = vpop.f32.mrf.mxu0
  %406 = vdwg.mxu0
  %v407 = vtanh.pop %v404
  %v408 = vld [vmem:[%s7] sm:$0xff]
  %v409 = vld [vmem:[%s7 + $0x8] sm:$0xff]
  %v410 = vld [vmem:[%s7 + $0x10] sm:$0xff]
  %v411 = vld [vmem:[%s7 + $0x18] sm:$0xff]
  %v412 = vld [vmem:[%s8] sm:$0x1]
  %v414 = vlaneseq
  %v415 = vshrl.u32 %v414, 7
  %v416 = vsub.s32 0, %v415
  %v417 = vrot.slane %v412, %v416
  %v420 = vsel %vm333, %v407, 0
  %422 = vmatprep.subr.mxu0 0.0
  %423 = vmatpush1.msra.mxu0 0.0
  %424 = vmatprep.subr.mxu0 0.0
  %425 = vmatpush1.msra.mxu0 0.0
  %426 = vmatprep.subr.mxu0 0.0
  %427 = vmatpush1.msra.mxu0 0.0
  %428 = vmatprep.subr.mxu0 0.0
  %429 = vmatpush1.msra.mxu0 0.0
  %430 = vmatprep.subr.mxu0 0.0
  %431 = vmatpush1.msra.mxu0 0.0
  %432 = vmatprep.subr.mxu0 0.0
  %433 = vmatpush1.msra.mxu0 0.0
  %434 = vmatprep.subr.mxu0 0.0
  %435 = vmatpush1.msra.mxu0 0.0
  %436 = vmatprep.subr.mxu0 0.0
  %437 = vmatpush1.msra.mxu0 0.0
  %438 = vmatprep.subr.mxu0 0.0
  %439 = vmatpush1.msra.mxu0 0.0
  %440 = vmatprep.subr.mxu0 0.0
  %441 = vmatpush1.msra.mxu0 0.0
  %442 = vmatprep.subr.mxu0 0.0
  %443 = vmatpush1.msra.mxu0 0.0
  %444 = vmatprep.subr.mxu0 0.0
  %445 = vmatpush1.msra.mxu0 0.0
  %446 = vmatprep.subr.mxu0 0.0
  %447 = vmatpush1.msra.mxu0 %v411
  %448 = vmatprep.subr.mxu0 0.0
  %449 = vmatpush1.msra.mxu0 %v410
  %450 = vmatprep.subr.mxu0 0.0
  %451 = vmatpush1.msra.mxu0 %v409
  %452 = vmatprep.subr.mxu0 0.0
  %453 = vmatpush1.msra.mxu0 %v408
  %454 = vmatprep.subr.mxu0 0.0
  %455 = vmatpush2.msra.mxu0 0.0
  %456 = vmatprep.subr.mxu0 0.0
  %457 = vmatpush2.msra.mxu0 0.0
  %458 = vmatprep.subr.mxu0 0.0
  %459 = vmatpush2.msra.mxu0 0.0
  %460 = vmatprep.subr.mxu0 0.0
  %461 = vmatpush2.msra.mxu0 0.0
  %462 = vmatprep.subr.mxu0 0.0
  %463 = vmatpush2.msra.mxu0 0.0
  %464 = vmatprep.subr.mxu0 0.0
  %465 = vmatpush2.msra.mxu0 0.0
  %466 = vmatprep.subr.mxu0 0.0
  %467 = vmatpush2.msra.mxu0 0.0
  %468 = vmatprep.subr.mxu0 0.0
  %469 = vmatpush2.msra.mxu0 0.0
  %470 = vmatprep.subr.mxu0 0.0
  %471 = vmatpush2.msra.mxu0 0.0
  %472 = vmatprep.subr.mxu0 0.0
  %473 = vmatpush2.msra.mxu0 0.0
  %474 = vmatprep.subr.mxu0 0.0
  %475 = vmatpush2.msra.mxu0 0.0
  %476 = vmatprep.subr.mxu0 0.0
  %477 = vmatpush2.msra.mxu0 0.0
  %478 = vmatprep.subr.mxu0 0.0
  %479 = vmatpush2.msra.mxu0 0.0
  %480 = vmatprep.subr.mxu0 0.0
  %481 = vmatpush2.msra.mxu0 0.0
  %482 = vmatprep.subr.mxu0 0.0
  %483 = vmatpush2.msra.mxu0 0.0
  %484 = vmatprep.subr.mxu0 0.0
  %485 = vmatpush2.msra.mxu0 0.0
  %486 = vmatprep.mubr.f32.mxu0 0.0
  %487 = vmatmul.mubr.f32.gmra.mxu0 %v420
  %v488 = vpop.f32.mrf.mxu0
  %v489 = vadd.f32 %v417, %v488
  %v490 = vpop.f32.mrf.mxu0
  %491 = vdwg.mxu0
  %v492 = vtanh.pop %v489
  %v493 = vpack.c.bf16 %v492, %v492
  %v494 = vld [vmem:[%s9] sm:$0xff]
  %v495 = vld [vmem:[%s9 + $0x8] sm:$0xf]
  %v496 = vld [vmem:[%s9 + $0xc] sm:$0xff]
  %v497 = vld [vmem:[%s9 + $0x14] sm:$0xf]
  %v498 = vld [vmem:[%s9 + $0x18] sm:$0xff]
  %v499 = vld [vmem:[%s9 + $0x20] sm:$0xf]
  %v500 = vld [vmem:[%s9 + $0x24] sm:$0xff]
  %v501 = vld [vmem:[%s9 + $0x2c] sm:$0xf]
  %v502 = vld [vmem:[%s9 + $0x30] sm:$0xff]
  %v503 = vld [vmem:[%s9 + $0x38] sm:$0xf]
  %v504 = vld [vmem:[%s9 + $0x3c] sm:$0xff]
  %v505 = vld [vmem:[%s9 + $0x44] sm:$0xf]
  %v506 = vld [vmem:[%s9 + $0x48] sm:$0xff]
  %v507 = vld [vmem:[%s9 + $0x50] sm:$0xf]
  %v508 = vld [vmem:[%s9 + $0x54] sm:$0xff]
  %v509 = vld [vmem:[%s9 + $0x5c] sm:$0xf]
  %v510 = vpack.c.bf16 %v319, %v319
  %v511 = vpack.c.bf16 %v320, %v320
  %v512 = vld [vmem:[%s10] sm:$0xff]
  %v513 = vld [vmem:[%s10 + $0x8] sm:$0xf]
  %v514 = vld [vmem:[%s10 + $0xc] sm:$0xff]
  %v515 = vld [vmem:[%s10 + $0x14] sm:$0xf]
  %v516 = vld [vmem:[%s10 + $0x18] sm:$0xff]
  %v517 = vld [vmem:[%s10 + $0x20] sm:$0xf]
  %v518 = vld [vmem:[%s10 + $0x24] sm:$0xff]
  %v519 = vld [vmem:[%s10 + $0x2c] sm:$0xf]
  %v520 = vld [vmem:[%s10 + $0x30] sm:$0xff]
  %v521 = vld [vmem:[%s10 + $0x38] sm:$0xf]
  %v522 = vld [vmem:[%s10 + $0x3c] sm:$0xff]
  %v523 = vld [vmem:[%s10 + $0x44] sm:$0xf]
  %v524 = vld [vmem:[%s10 + $0x48] sm:$0xff]
  %v525 = vld [vmem:[%s10 + $0x50] sm:$0xf]
  %v526 = vld [vmem:[%s10 + $0x54] sm:$0xff]
  %v527 = vld [vmem:[%s10 + $0x5c] sm:$0xf]
  %v528 = vld [vmem:[%s10 + $0x60] sm:$0xff]
  %v529 = vld [vmem:[%s10 + $0x68] sm:$0xf]
  %v530 = vld [vmem:[%s10 + $0x6c] sm:$0xff]
  %v531 = vld [vmem:[%s10 + $0x74] sm:$0xf]
  %v532 = vld [vmem:[%s10 + $0x78] sm:$0xff]
  %v533 = vld [vmem:[%s10 + $0x80] sm:$0xf]
  %v534 = vld [vmem:[%s10 + $0x84] sm:$0xff]
  %v535 = vld [vmem:[%s10 + $0x8c] sm:$0xf]
  %v536 = vld [vmem:[%s10 + $0x90] sm:$0xff]
  %v537 = vld [vmem:[%s10 + $0x98] sm:$0xf]
  %v538 = vld [vmem:[%s10 + $0x9c] sm:$0xff]
  %v539 = vld [vmem:[%s10 + $0xa4] sm:$0xf]
  %v540 = vld [vmem:[%s10 + $0xa8] sm:$0xff]
  %v541 = vld [vmem:[%s10 + $0xb0] sm:$0xf]
  %v542 = vld [vmem:[%s10 + $0xb4] sm:$0xff]
  %v543 = vld [vmem:[%s10 + $0xbc] sm:$0xf]
  %v544 = vld [vmem:[%s10 + $0xc0] sm:$0xff]
  %v545 = vld [vmem:[%s10 + $0xc8] sm:$0xf]
  %v546 = vld [vmem:[%s10 + $0xcc] sm:$0xff]
  %v547 = vld [vmem:[%s10 + $0xd4] sm:$0xf]
  %v548 = vld [vmem:[%s10 + $0xd8] sm:$0xff]
  %v549 = vld [vmem:[%s10 + $0xe0] sm:$0xf]
  %v550 = vld [vmem:[%s10 + $0xe4] sm:$0xff]
  %v551 = vld [vmem:[%s10 + $0xec] sm:$0xf]
  %v552 = vld [vmem:[%s10 + $0xf0] sm:$0xff]
  %v553 = vld [vmem:[%s10 + $0xf8] sm:$0xf]
  %v554 = vld [vmem:[%s10 + $0xfc] sm:$0xff]
  %v555 = vld [vmem:[%s10 + $0x104] sm:$0xf]
  %v556 = vld [vmem:[%s10 + $0x108] sm:$0xff]
  %v557 = vld [vmem:[%s10 + $0x110] sm:$0xf]
  %v558 = vld [vmem:[%s10 + $0x114] sm:$0xff]
  %v559 = vld [vmem:[%s10 + $0x11c] sm:$0xf]
  %v560 = vld [vmem:[%s10 + $0x120] sm:$0xff]
  %v561 = vld [vmem:[%s10 + $0x128] sm:$0xf]
  %v562 = vld [vmem:[%s10 + $0x12c] sm:$0xff]
  %v563 = vld [vmem:[%s10 + $0x134] sm:$0xf]
  %v564 = vld [vmem:[%s10 + $0x138] sm:$0xff]
  %v565 = vld [vmem:[%s10 + $0x140] sm:$0xf]
  %v566 = vld [vmem:[%s10 + $0x144] sm:$0xff]
  %v567 = vld [vmem:[%s10 + $0x14c] sm:$0xf]
  %v568 = vld [vmem:[%s10 + $0x150] sm:$0xff]
  %v569 = vld [vmem:[%s10 + $0x158] sm:$0xf]
  %v570 = vld [vmem:[%s10 + $0x15c] sm:$0xff]
  %v571 = vld [vmem:[%s10 + $0x164] sm:$0xf]
  %v572 = vld [vmem:[%s10 + $0x168] sm:$0xff]
  %v573 = vld [vmem:[%s10 + $0x170] sm:$0xf]
  %v574 = vld [vmem:[%s10 + $0x174] sm:$0xff]
  %v575 = vld [vmem:[%s10 + $0x17c] sm:$0xf]
  %v640 = vunpack.c.l.b16 %v512
  %v641 = vunpack.c.h.b16 %v512
  %v642 = vunpack.c.l.b16 %v513
  %v643 = vunpack.c.l.b16 %v514
  %v644 = vunpack.c.h.b16 %v514
  %v645 = vunpack.c.l.b16 %v515
  %v646 = vunpack.c.l.b16 %v516
  %v647 = vunpack.c.h.b16 %v516
  %v648 = vunpack.c.l.b16 %v517
  %v649 = vunpack.c.l.b16 %v518
  %v650 = vunpack.c.h.b16 %v518
  %v651 = vunpack.c.l.b16 %v519
  %v652 = vunpack.c.l.b16 %v520
  %v653 = vunpack.c.h.b16 %v520
  %v654 = vunpack.c.l.b16 %v521
  %v655 = vunpack.c.l.b16 %v522
  %v656 = vunpack.c.h.b16 %v522
  %v657 = vunpack.c.l.b16 %v523
  %v658 = vunpack.c.l.b16 %v524
  %v659 = vunpack.c.h.b16 %v524
  %v660 = vunpack.c.l.b16 %v525
  %v661 = vunpack.c.l.b16 %v526
  %v662 = vunpack.c.h.b16 %v526
  %v663 = vunpack.c.l.b16 %v527
  %v664 = vunpack.c.l.b16 %v528
  %v665 = vunpack.c.h.b16 %v528
  %v666 = vunpack.c.l.b16 %v529
  %v667 = vunpack.c.l.b16 %v530
  %v668 = vunpack.c.h.b16 %v530
  %v669 = vunpack.c.l.b16 %v531
  %v670 = vunpack.c.l.b16 %v532
  %v671 = vunpack.c.h.b16 %v532
  %v672 = vunpack.c.l.b16 %v533
  %v673 = vunpack.c.l.b16 %v534
  %v674 = vunpack.c.h.b16 %v534
  %v675 = vunpack.c.l.b16 %v535
  %v676 = vunpack.c.l.b16 %v536
  %v677 = vunpack.c.h.b16 %v536
  %v678 = vunpack.c.l.b16 %v537
  %v679 = vunpack.c.l.b16 %v538
  %v680 = vunpack.c.h.b16 %v538
  %v681 = vunpack.c.l.b16 %v539
  %v682 = vunpack.c.l.b16 %v540
  %v683 = vunpack.c.h.b16 %v540
  %v684 = vunpack.c.l.b16 %v541
  %v685 = vunpack.c.l.b16 %v542
  %v686 = vunpack.c.h.b16 %v542
  %v687 = vunpack.c.l.b16 %v543
  %v688 = vunpack.c.l.b16 %v544
  %v689 = vunpack.c.h.b16 %v544
  %v690 = vunpack.c.l.b16 %v545
  %v691 = vunpack.c.l.b16 %v546
  %v692 = vunpack.c.h.b16 %v546
  %v693 = vunpack.c.l.b16 %v547
  %v694 = vunpack.c.l.b16 %v548
  %v695 = vunpack.c.h.b16 %v548
  %v696 = vunpack.c.l.b16 %v549
  %v697 = vunpack.c.l.b16 %v550
  %v698 = vunpack.c.h.b16 %v550
  %v699 = vunpack.c.l.b16 %v551
  %v700 = vunpack.c.l.b16 %v552
  %v701 = vunpack.c.h.b16 %v552
  %v702 = vunpack.c.l.b16 %v553
  %v703 = vunpack.c.l.b16 %v554
  %v704 = vunpack.c.h.b16 %v554
  %v705 = vunpack.c.l.b16 %v555
  %v706 = vunpack.c.l.b16 %v556
  %v707 = vunpack.c.h.b16 %v556
  %v708 = vunpack.c.l.b16 %v557
  %v709 = vunpack.c.l.b16 %v558
  %v710 = vunpack.c.h.b16 %v558
  %v711 = vunpack.c.l.b16 %v559
  %v712 = vunpack.c.l.b16 %v560
  %v713 = vunpack.c.h.b16 %v560
  %v714 = vunpack.c.l.b16 %v561
  %v715 = vunpack.c.l.b16 %v562
  %v716 = vunpack.c.h.b16 %v562
  %v717 = vunpack.c.l.b16 %v563
  %v718 = vunpack.c.l.b16 %v564
  %v719 = vunpack.c.h.b16 %v564
  %v720 = vunpack.c.l.b16 %v565
  %v721 = vunpack.c.l.b16 %v566
  %v722 = vunpack.c.h.b16 %v566
  %v723 = vunpack.c.l.b16 %v567
  %v724 = vunpack.c.l.b16 %v568
  %v725 = vunpack.c.h.b16 %v568
  %v726 = vunpack.c.l.b16 %v569
  %v727 = vunpack.c.l.b16 %v570
  %v728 = vunpack.c.h.b16 %v570
  %v729 = vunpack.c.l.b16 %v571
  %v730 = vunpack.c.l.b16 %v572
  %v731 = vunpack.c.h.b16 %v572
  %v732 = vunpack.c.l.b16 %v573
  %v733 = vunpack.c.l.b16 %v574
  %v734 = vunpack.c.h.b16 %v574
  %v735 = vunpack.c.l.b16 %v575
  %v736 = vpack.c.b16 %v643, %v640
  %v737 = vpack.c.b16 %v644, %v641
  %v738 = vpack.c.b16 %v645, %v642
  %v739 = vpack.c.b16 %v649, %v646
  %v740 = vpack.c.b16 %v650, %v647
  %v741 = vpack.c.b16 %v651, %v648
  %v742 = vpack.c.b16 %v655, %v652
  %v743 = vpack.c.b16 %v656, %v653
  %v744 = vpack.c.b16 %v657, %v654
  %v745 = vpack.c.b16 %v661, %v658
  %v746 = vpack.c.b16 %v662, %v659
  %v747 = vpack.c.b16 %v663, %v660
  %v748 = vpack.c.b16 %v667, %v664
  %v749 = vpack.c.b16 %v668, %v665
  %v750 = vpack.c.b16 %v669, %v666
  %v751 = vpack.c.b16 %v673, %v670
  %v752 = vpack.c.b16 %v674, %v671
  %v753 = vpack.c.b16 %v675, %v672
  %v754 = vpack.c.b16 %v679, %v676
  %v755 = vpack.c.b16 %v680, %v677
  %v756 = vpack.c.b16 %v681, %v678
  %v757 = vpack.c.b16 %v685, %v682
  %v758 = vpack.c.b16 %v686, %v683
  %v759 = vpack.c.b16 %v687, %v684
  %v760 = vpack.c.b16 %v691, %v688
  %v761 = vpack.c.b16 %v692, %v689
  %v762 = vpack.c.b16 %v693, %v690
  %v763 = vpack.c.b16 %v697, %v694
  %v764 = vpack.c.b16 %v698, %v695
  %v765 = vpack.c.b16 %v699, %v696
  %v766 = vpack.c.b16 %v703, %v700
  %v767 = vpack.c.b16 %v704, %v701
  %v768 = vpack.c.b16 %v705, %v702
  %v769 = vpack.c.b16 %v709, %v706
  %v770 = vpack.c.b16 %v710, %v707
  %v771 = vpack.c.b16 %v711, %v708
  %v772 = vpack.c.b16 %v715, %v712
  %v773 = vpack.c.b16 %v716, %v713
  %v774 = vpack.c.b16 %v717, %v714
  %v775 = vpack.c.b16 %v721, %v718
  %v776 = vpack.c.b16 %v722, %v719
  %v777 = vpack.c.b16 %v723, %v720
  %v778 = vpack.c.b16 %v727, %v724
  %v779 = vpack.c.b16 %v728, %v725
  %v780 = vpack.c.b16 %v729, %v726
  %v781 = vpack.c.b16 %v733, %v730
  %v782 = vpack.c.b16 %v734, %v731
  %v783 = vpack.c.b16 %v735, %v732
  %832 = vmatprep.subr.bf16.mxu0 %v758
  %833 = vmatpush1.bf16.msra.mxu0 %v757
  %834 = vmatprep.subr.bf16.mxu0 %v755
  %835 = vmatpush1.bf16.msra.mxu0 %v754
  %836 = vmatprep.subr.bf16.mxu0 %v752
  %837 = vmatpush1.bf16.msra.mxu0 %v751
  %838 = vmatprep.subr.bf16.mxu0 %v749
  %839 = vmatpush1.bf16.msra.mxu0 %v748
  %840 = vmatprep.subr.bf16.mxu0 %v746
  %841 = vmatpush1.bf16.msra.mxu0 %v745
  %842 = vmatprep.subr.bf16.mxu0 %v743
  %843 = vmatpush1.bf16.msra.mxu0 %v742
  %844 = vmatprep.subr.bf16.mxu0 %v740
  %845 = vmatpush1.bf16.msra.mxu0 %v739
  %846 = vmatprep.subr.bf16.mxu0 %v737
  %847 = vmatpush1.bf16.msra.mxu0 %v736
  %848 = vmatprep.subr.bf16.mxu0 %v782
  %849 = vmatpush2.bf16.msra.mxu0 %v781
  %850 = vmatprep.subr.bf16.mxu0 %v779
  %851 = vmatpush2.bf16.msra.mxu0 %v778
  %852 = vmatprep.subr.bf16.mxu0 %v776
  %853 = vmatpush2.bf16.msra.mxu0 %v775
  %854 = vmatprep.subr.bf16.mxu0 %v773
  %855 = vmatpush2.bf16.msra.mxu0 %v772
  %856 = vmatprep.subr.bf16.mxu0 %v770
  %857 = vmatpush2.bf16.msra.mxu0 %v769
  %858 = vmatprep.subr.bf16.mxu0 %v767
  %859 = vmatpush2.bf16.msra.mxu0 %v766
  %860 = vmatprep.subr.bf16.mxu0 %v764
  %861 = vmatpush2.bf16.msra.mxu0 %v763
  %862 = vmatprep.subr.bf16.mxu0 %v761
  %863 = vmatpush2.bf16.msra.mxu0 %v760
  %864 = vmatprep.mubr.bf16.mxu0 %v511
  %865 = vmatmul.mubr.bf16.gmra.mxu0 %v510
  %v866 = vpop.f32.mrf.mxu0
  %v867 = vadd.f32 0.0, %v866
  %v868 = vpop.f32.mrf.mxu0
  %v869 = vadd.f32 0.0, %v868
  %v870 = vpop.f32.mrf.mxu0
  %v871 = vpop.f32.mrf.mxu0
  %872 = vdwg.mxu0
  %873 = vmatprep.subr.bf16.mxu0 0
  %874 = vmatpush1.bf16.msra.mxu0 %v759
  %875 = vmatprep.subr.bf16.mxu0 0
  %876 = vmatpush1.bf16.msra.mxu0 %v756
  %877 = vmatprep.subr.bf16.mxu0 0
  %878 = vmatpush1.bf16.msra.mxu0 %v753
  %879 = vmatprep.subr.bf16.mxu0 0
  %880 = vmatpush1.bf16.msra.mxu0 %v750
  %881 = vmatprep.subr.bf16.mxu0 0
  %882 = vmatpush1.bf16.msra.mxu0 %v747
  %883 = vmatprep.subr.bf16.mxu0 0
  %884 = vmatpush1.bf16.msra.mxu0 %v744
  %885 = vmatprep.subr.bf16.mxu0 0
  %886 = vmatpush1.bf16.msra.mxu0 %v741
  %887 = vmatprep.subr.bf16.mxu0 0
  %888 = vmatpush1.bf16.msra.mxu0 %v738
  %889 = vmatprep.subr.bf16.mxu0 0
  %890 = vmatpush2.bf16.msra.mxu0 %v783
  %891 = vmatprep.subr.bf16.mxu0 0
  %892 = vmatpush2.bf16.msra.mxu0 %v780
  %893 = vmatprep.subr.bf16.mxu0 0
  %894 = vmatpush2.bf16.msra.mxu0 %v777
  %895 = vmatprep.subr.bf16.mxu0 0
  %896 = vmatpush2.bf16.msra.mxu0 %v774
  %897 = vmatprep.subr.bf16.mxu0 0
  %898 = vmatpush2.bf16.msra.mxu0 %v771
  %899 = vmatprep.subr.bf16.mxu0 0
  %900 = vmatpush2.bf16.msra.mxu0 %v768
  %901 = vmatprep.subr.bf16.mxu0 0
  %902 = vmatpush2.bf16.msra.mxu0 %v765
  %903 = vmatprep.subr.bf16.mxu0 0
  %904 = vmatpush2.bf16.msra.mxu0 %v762
  %905 = vmatprep.mubr.bf16.mxu0 %v511
  %906 = vmatmul.mubr.bf16.gmra.mxu0 %v510
  %v907 = vpop.f32.mrf.mxu0
  %v908 = vadd.f32 0.0, %v907
  %v909 = vpop.f32.mrf.mxu0
  %v910 = vpop.f32.mrf.mxu0
  %v911 = vpop.f32.mrf.mxu0
  %912 = vdwg.mxu0
  %v929 = vunpack.c.l.b16 %v494
  %v930 = vunpack.c.h.b16 %v494
  %v931 = vunpack.c.l.b16 %v495
  %v932 = vunpack.c.l.b16 %v496
  %v933 = vunpack.c.h.b16 %v496
  %v934 = vunpack.c.l.b16 %v497
  %v935 = vunpack.c.l.b16 %v498
  %v936 = vunpack.c.h.b16 %v498
  %v937 = vunpack.c.l.b16 %v499
  %v938 = vunpack.c.l.b16 %v500
  %v939 = vunpack.c.h.b16 %v500
  %v940 = vunpack.c.l.b16 %v501
  %v941 = vunpack.c.l.b16 %v502
  %v942 = vunpack.c.h.b16 %v502
  %v943 = vunpack.c.l.b16 %v503
  %v944 = vunpack.c.l.b16 %v504
  %v945 = vunpack.c.h.b16 %v504
  %v946 = vunpack.c.l.b16 %v505
  %v947 = vunpack.c.l.b16 %v506
  %v948 = vunpack.c.h.b16 %v506
  %v949 = vunpack.c.l.b16 %v507
  %v950 = vunpack.c.l.b16 %v508
  %v951 = vunpack.c.h.b16 %v508
  %v952 = vunpack.c.l.b16 %v509
  %v953 = vpack.c.b16 %v932, %v929
  %v954 = vpack.c.b16 %v933, %v930
  %v955 = vpack.c.b16 %v934, %v931
  %v956 = vpack.c.b16 %v938, %v935
  %v957 = vpack.c.b16 %v939, %v936
  %v958 = vpack.c.b16 %v940, %v937
  %v959 = vpack.c.b16 %v944, %v941
  %v960 = vpack.c.b16 %v945, %v942
  %v961 = vpack.c.b16 %v946, %v943
  %v962 = vpack.c.b16 %v950, %v947
  %v963 = vpack.c.b16 %v951, %v948
  %v964 = vpack.c.b16 %v952, %v949
  %v978 = vsel %vm299, %v493, 0
  %980 = vmatprep.subr.bf16.mxu0 0
  %981 = vmatpush1.bf16.msra.mxu0 0
  %982 = vmatprep.subr.bf16.mxu0 0
  %983 = vmatpush1.bf16.msra.mxu0 0
  %984 = vmatprep.subr.bf16.mxu0 0
  %985 = vmatpush1.bf16.msra.mxu0 0
  %986 = vmatprep.subr.bf16.mxu0 0
  %987 = vmatpush1.bf16.msra.mxu0 0
  %988 = vmatprep.subr.bf16.mxu0 %v963
  %989 = vmatpush1.bf16.msra.mxu0 %v962
  %990 = vmatprep.subr.bf16.mxu0 %v960
  %991 = vmatpush1.bf16.msra.mxu0 %v959
  %992 = vmatprep.subr.bf16.mxu0 %v957
  %993 = vmatpush1.bf16.msra.mxu0 %v956
  %994 = vmatprep.subr.bf16.mxu0 %v954
  %995 = vmatpush1.bf16.msra.mxu0 %v953
  %996 = vmatprep.subr.bf16.mxu0 0
  %997 = vmatpush2.bf16.msra.mxu0 0
  %998 = vmatprep.subr.bf16.mxu0 0
  %999 = vmatpush2.bf16.msra.mxu0 0
  %1000 = vmatprep.subr.bf16.mxu0 0
  %1001 = vmatpush2.bf16.msra.mxu0 0
  %1002 = vmatprep.subr.bf16.mxu0 0
  %1003 = vmatpush2.bf16.msra.mxu0 0
  %1004 = vmatprep.subr.bf16.mxu0 0
  %1005 = vmatpush2.bf16.msra.mxu0 0
  %1006 = vmatprep.subr.bf16.mxu0 0
  %1007 = vmatpush2.bf16.msra.mxu0 0
  %1008 = vmatprep.subr.bf16.mxu0 0
  %1009 = vmatpush2.bf16.msra.mxu0 0
  %1010 = vmatprep.subr.bf16.mxu0 0
  %1011 = vmatpush2.bf16.msra.mxu0 0
  %1012 = vmatprep.mubr.bf16.mxu0 0
  %1013 = vmatmul.mubr.bf16.gmra.mxu0 %v978
  %v1014 = vpop.f32.mrf.mxu0
  %v1015 = vadd.f32 %v867, %v1014
  %v1016 = vpop.f32.mrf.mxu0
  %v1017 = vadd.f32 %v869, %v1016
  %v1018 = vpop.f32.mrf.mxu0
  %v1019 = vpop.f32.mrf.mxu0
  %1020 = vdwg.mxu0
  %1021 = vmatprep.subr.bf16.mxu0 0
  %1022 = vmatpush1.bf16.msra.mxu0 0
  %1023 = vmatprep.subr.bf16.mxu0 0
  %1024 = vmatpush1.bf16.msra.mxu0 0
  %1025 = vmatprep.subr.bf16.mxu0 0
  %1026 = vmatpush1.bf16.msra.mxu0 0
  %1027 = vmatprep.subr.bf16.mxu0 0
  %1028 = vmatpush1.bf16.msra.mxu0 0
  %1029 = vmatprep.subr.bf16.mxu0 0
  %1030 = vmatpush1.bf16.msra.mxu0 %v964
  %1031 = vmatprep.subr.bf16.mxu0 0
  %1032 = vmatpush1.bf16.msra.mxu0 %v961
  %1033 = vmatprep.subr.bf16.mxu0 0
  %1034 = vmatpush1.bf16.msra.mxu0 %v958
  %1035 = vmatprep.subr.bf16.mxu0 0
  %1036 = vmatpush1.bf16.msra.mxu0 %v955
  %1037 = vmatprep.subr.bf16.mxu0 0
  %1038 = vmatpush2.bf16.msra.mxu0 0
  %1039 = vmatprep.subr.bf16.mxu0 0
  %1040 = vmatpush2.bf16.msra.mxu0 0
  %1041 = vmatprep.subr.bf16.mxu0 0
  %1042 = vmatpush2.bf16.msra.mxu0 0
  %1043 = vmatprep.subr.bf16.mxu0 0
  %1044 = vmatpush2.bf16.msra.mxu0 0
  %1045 = vmatprep.subr.bf16.mxu0 0
  %1046 = vmatpush2.bf16.msra.mxu0 0
  %1047 = vmatprep.subr.bf16.mxu0 0
  %1048 = vmatpush2.bf16.msra.mxu0 0
  %1049 = vmatprep.subr.bf16.mxu0 0
  %1050 = vmatpush2.bf16.msra.mxu0 0
  %1051 = vmatprep.subr.bf16.mxu0 0
  %1052 = vmatpush2.bf16.msra.mxu0 0
  %1053 = vmatprep.mubr.bf16.mxu0 0
  %1054 = vmatmul.mubr.bf16.gmra.mxu0 %v978
  %v1055 = vpop.f32.mrf.mxu0
  %v1056 = vadd.f32 %v908, %v1055
  %v1057 = vpop.f32.mrf.mxu0
  %v1058 = vpop.f32.mrf.mxu0
  %v1059 = vpop.f32.mrf.mxu0
  %1060 = vdwg.mxu0
  %s1061 = sld [smem:[#allocation2]]
  %v1062 = vstv %s1061
  %v1063 = vadd.f32 %v1015, %v1062
  %v1064 = vadd.f32 %v1017, %v1062
  %v1065 = vadd.f32 %v1056, %v1062
  %v1066 = vlaneseq
  %v1067 = vand.u32 %v1066, 127
  %v1068 = vadd.s32 %v1067, 128
  %v1069 = vadd.s32 %v1067, 256
  %vm1070 = vcmp.lt.s32.totalorder %v1067, 289
  %vm1071 = vcmp.lt.s32.totalorder %v1068, 289
  %vm1072 = vcmp.lt.s32.totalorder %v1069, 289
  %v1073 = vsel %vm1070, %v1063, -1e+30
  %v1074 = vsel %vm1071, %v1064, -1e+30
  %v1075 = vsel %vm1072, %v1065, -1e+30
  %v1076 = vld [vmem:[%s12] sm:$0x3f]
  %v1077 = vld [vmem:[%s12 + $0x8] sm:$0x3f]
  %v1078 = vld [vmem:[%s12 + $0x10] sm:$0x3f]
  %v1079 = vadd.f32 %v1076, 1e-10
  %v1080 = vadd.f32 %v1077, 1e-10
  %v1081 = vadd.f32 %v1078, 1e-10
  %v1082 = vlog2.pop %v1079
  %v1083 = vmul.f32 %v1082, 0.6931472
  %v1084 = vlog2.pop %v1080
  %v1085 = vmul.f32 %v1084, 0.6931472
  %v1086 = vlog2.pop %v1081
  %v1087 = vmul.f32 %v1086, 0.6931472
  %v1088 = vsub.f32 1e-10, %v1083
  %v1089 = vsub.f32 1e-10, %v1085
  %v1090 = vsub.f32 1e-10, %v1087
  %v1091 = vlog2.pop %v1088
  %v1092 = vmul.f32 %v1091, 0.6931472
  %v1093 = vlog2.pop %v1089
  %v1094 = vmul.f32 %v1093, 0.6931472
  %v1095 = vlog2.pop %v1090
  %v1096 = vmul.f32 %v1095, 0.6931472
  %v1097 = vsub.f32 0.0, %v1092
  %v1098 = vsub.f32 0.0, %v1094
  %v1099 = vsub.f32 0.0, %v1096
  %v1100 = vadd.f32 %v1073, %v1097
  %v1101 = vadd.f32 %v1074, %v1098
  %v1102 = vadd.f32 %v1075, %v1099
  %v1106 = vrot.slane %v1073, 6
  %v1107 = vrot.slane %v1074, 6
  %v1108 = vrot.slane %v1075, 6
  %vm1112 = vcmask 1041408
  %v1113 = vsel %vm1112, %v1100, %v1106
  %v1114 = vsel %vm1112, %v1101, %v1107
  %v1115 = vsel %vm1112, %v1102, %v1108
  %v1116 = vsel %vm74, %v1113, -inf
  %v1117 = vsel %vm74, %v1114, -inf
  %v1118 = vsel %vm74, %v1115, -inf
  %v1119 = vmax.f32 %v1116, %v1117
  %v1120 = vmax.f32 %v1119, %v1118
  %1121 = vmax.xlane.f32.xlu0 %v1120
  %v1122 = vpop.xlane.xlu0 %1121
  %v1123 = vsub.f32 %v1113, %v1122
  %v1124 = vsub.f32 %v1114, %v1122
  %v1125 = vsub.f32 %v1115, %v1122
  %v1126 = vmul.f32 %v1123, 1.442695
  %v1127 = vpow.pop %v1126
  %v1128 = vmul.f32 %v1124, 1.442695
  %v1129 = vpow.pop %v1128
  %v1130 = vmul.f32 %v1125, 1.442695
  %v1131 = vpow.pop %v1130
  %v1132 = vsel %vm74, %v1127, 0.0
  %v1133 = vsel %vm74, %v1129, 0.0
  %v1134 = vadd.f32 %v1132, %v1133
  %v1135 = vsel %vm74, %v1131, 0.0
  %v1136 = vadd.f32 %v1134, %v1135
  %1137 = vadd.xlane.f32.xlu0 %v1136
  %v1138 = vpop.xlane.xlu0 %1137
  %v1139 = vrcp.pop %v1138
  %v1140 = vmul.f32 %v1127, %v1139
  %v1141 = vmul.f32 %v1129, %v1139
  %v1142 = vmul.f32 %v1131, %v1139
  %v1143 = vsel %vm1112, %v1140, -inf
  %v1144 = vsel %vm1112, %v1141, -inf
  %v1145 = vsel %vm1112, %v1142, -inf
  %v1146 = vmax.f32 %v1143, %v1144
  %v1147 = vmax.f32 %v1146, %v1145
  %1148 = vmax.xlane.f32.xlu0 %v1147
  %v1149 = vpop.xlane.xlu0 %1148
  %vm1150 = vcmp.eq.f32.partialorder %v1140, %v1149
  %vm1151 = vcmp.eq.f32.partialorder %v1141, %v1149
  %vm1152 = vcmp.eq.f32.partialorder %v1142, %v1149
  %v1153 = vsel %vm1150, %v1067, 384
  %v1154 = vsel %vm1151, %v1068, 384
  %v1155 = vsel %vm1152, %v1069, 384
  %v1156 = vsel %vm1112, %v1153, 2147483647
  %v1157 = vsel %vm1112, %v1154, 2147483647
  %v1158 = vsel %vm1112, %v1155, 2147483647
  %vm1159 = vcmp.lt.s32.totalorder %v1156, %v1157
  %v1160 = vsel %vm1159, %v1156, %v1157
  %vm1161 = vcmp.lt.s32.totalorder %v1160, %v1158
  %v1162 = vsel %vm1161, %v1160, %v1158
  %v1163 = vand.u32 %v1162, 65535
  %v1164 = vshra.s32 %v1162, 16
  %v1165 = vcvt.s32.f32 %v1163
  %v1166 = vcvt.s32.f32 %v1164
  %1167 = vmin.xlane.f32.xlu0 %v1166
  %v1168 = vpop.xlane.xlu0 %1167
  %vm1169 = vcmp.eq.f32.partialorder %v1166, %v1168
  %v1170 = vsel %vm1169, %v1165, inf
  %1171 = vmin.xlane.f32.xlu0 %v1170
  %v1172 = vpop.xlane.xlu0 %1171
  %v1173 = vcvt.f32.s32 %v1172
  %v1174 = vcvt.f32.s32 %v1168
  %v1175 = vshll.u32 %v1174, 16
  %v1176 = vadd.s32 %v1175, %v1173
  %vm1177 = vcmp.eq.s32.totalorder %v1067, %v1176
  %vm1178 = vcmp.eq.s32.totalorder %v1068, %v1176
  %vm1179 = vcmp.eq.s32.totalorder %v1069, %v1176
  %v1180 = vsel %vm1177, 1, 0
  %v1181 = vsel %vm1178, 1, 0
  %v1182 = vsel %vm1179, 1, 0
  %v1183 = vcvt.s32.f32 %v1180
  %v1184 = vcvt.s32.f32 %v1181
  %v1185 = vcvt.s32.f32 %v1182
  %v1186 = vld [vmem:[%s11] ss:$2 sm:$0x7]
  %v1188 = vlaneseq
  %v1189 = vshrl.u32 %v1188, 7
  %v1190 = vsub.s32 0, %v1189
  %v1191 = vrot.slane %v1186, %v1190
  %v1192 = vlaneseq
  %v1193 = vshrl.u32 %v1192, 7
  %v1194 = vsub.s32 1, %v1193
  %v1195 = vrot.slane %v1186, %v1194
  %v1196 = vlaneseq
  %v1197 = vshrl.u32 %v1196, 7
  %v1198 = vsub.s32 2, %v1197
  %v1199 = vrot.slane %v1186, %v1198
  %v1203 = vadd.f32 %v1191, %v1076
  %v1204 = vadd.f32 %v1195, %v1077
  %v1205 = vadd.f32 %v1199, %v1078
  %s1206 = scalar_lea.vmem %s11, 1
  %v1207 = vld [vmem:[%s1206] ss:$2 sm:$0x7]
  %v1209 = vlaneseq
  %v1210 = vshrl.u32 %v1209, 7
  %v1211 = vsub.s32 0, %v1210
  %v1212 = vrot.slane %v1207, %v1211
  %v1213 = vlaneseq
  %v1214 = vshrl.u32 %v1213, 7
  %v1215 = vsub.s32 1, %v1214
  %v1216 = vrot.slane %v1207, %v1215
  %v1217 = vlaneseq
  %v1218 = vshrl.u32 %v1217, 7
  %v1219 = vsub.s32 2, %v1218
  %v1220 = vrot.slane %v1207, %v1219
  %v1224 = vadd.f32 %v1212, %v1076
  %v1225 = vadd.f32 %v1216, %v1077
  %v1226 = vadd.f32 %v1220, %v1078
  %v1230 = vrot.slane %v1183, 6
  %v1231 = vrot.slane %v1184, 6
  %v1232 = vrot.slane %v1185, 6
  %v1236 = vmul.f32 %v1203, %v1230
  %v1237 = vmul.f32 %v1204, %v1231
  %v1238 = vmul.f32 %v1205, %v1232
  %vm1239 = vcmask 1043458
  %v1240 = vsel %vm1239, %v1236, 0.0
  %v1241 = vsel %vm1239, %v1237, 0.0
  %v1242 = vadd.f32 %v1240, %v1241
  %v1243 = vsel %vm1239, %v1238, 0.0
  %v1244 = vadd.f32 %v1242, %v1243
  %1245 = vadd.xlane.f32.xlu0 %v1244
  %v1246 = vpop.xlane.xlu0 %1245
  %v1247 = vmul.f32 %v1246, 0.25
  %v1248 = vrot.slane %v1183, 4
  %v1249 = vrot.slane %v1184, 4
  %v1250 = vrot.slane %v1185, 4
  %v1254 = vmul.f32 %v1224, %v1248
  %v1255 = vmul.f32 %v1225, %v1249
  %v1256 = vmul.f32 %v1226, %v1250
  %vm1257 = vcmask 1045508
  %v1258 = vsel %vm1257, %v1254, 0.0
  %v1259 = vsel %vm1257, %v1255, 0.0
  %v1260 = vadd.f32 %v1258, %v1259
  %v1261 = vsel %vm1257, %v1256, 0.0
  %v1262 = vadd.f32 %v1260, %v1261
  %1263 = vadd.xlane.f32.xlu0 %v1262
  %v1264 = vpop.xlane.xlu0 %1263
  %v1265 = vmul.f32 %v1264, 0.25
  %vm1266 = vcmp.eq.s32.totalorder %v1067, 289
  %vm1267 = vcmp.eq.s32.totalorder %v1068, 289
  %vm1268 = vcmp.eq.s32.totalorder %v1069, 289
  %vm1269 = vcmp.eq.s32.totalorder %v1067, 290
  %vm1270 = vcmp.eq.s32.totalorder %v1068, 290
  %vm1271 = vcmp.eq.s32.totalorder %v1069, 290
  %v1272 = vrot.slane %v1073, 4
  %v1273 = vrot.slane %v1074, 4
  %v1274 = vrot.slane %v1075, 4
  %v1278 = vsel %vm1269, %v1265, %v1272
  %v1279 = vsel %vm1270, %v1265, %v1273
  %v1280 = vsel %vm1271, %v1265, %v1274
  %v1284 = vrot.slane %v1278, 2
  %v1285 = vrot.slane %v1279, 2
  %v1286 = vrot.slane %v1280, 2
  %v1290 = vsel %vm1266, %v1247, %v1284
  %v1291 = vsel %vm1267, %v1247, %v1285
  %v1292 = vsel %vm1268, %v1247, %v1286
  %v1296 = vrot.slane %v1290, 2
  %v1297 = vrot.slane %v1291, 2
  %v1298 = vrot.slane %v1292, 2
  %1302 = vst [vmem:[%s14] sm:$0x3] %v1296
  %1303 = vst [vmem:[%s14 + $0x8] sm:$0x3] %v1297
  %1304 = vst [vmem:[%s14 + $0x10] sm:$0x3] %v1298
  %1305 = vst [vmem:[%s14] sm:$0xc] %v1230
  %1306 = vst [vmem:[%s14 + $0x8] sm:$0xc] %v1231
  %1307 = vst [vmem:[%s14 + $0x10] sm:$0xc] %v1232
  %v1308 = vmax.f32 %v1140, 1e-10
  %v1309 = vmax.f32 %v1141, 1e-10
  %v1310 = vmax.f32 %v1142, 1e-10
  %v1314 = vrot.slane %v1308, 4
  %v1315 = vrot.slane %v1309, 4
  %v1316 = vrot.slane %v1310, 4
  %1320 = vst [vmem:[%s14] sm:$0x30] %v1314
  %1321 = vst [vmem:[%s14 + $0x8] sm:$0x30] %v1315
  %1322 = vst [vmem:[%s14 + $0x10] sm:$0x30] %v1316
  %v1326 = vrot.slane %v1140, 4
  %v1327 = vrot.slane %v1141, 4
  %v1328 = vrot.slane %v1142, 4
  %1332 = vst [vmem:[%s14] sm:$0xc0] %v1326
  %1333 = vst [vmem:[%s14 + $0x8] sm:$0xc0] %v1327
  %1334 = vst [vmem:[%s14 + $0x10] sm:$0xc0] %v1328
  // Predicated region
  $region58: #{goal_global_forward.1} parent=0 // pred_check
    _
  $region59: #{goal_global_forward.1} parent=0 // pred_check_branch
    %1336 = sbr.rel (0) target = $region61
  $region60: #{goal_global_forward.1} parent=0 // pred_region
    _
  $region61: #{goal_global_forward.1} parent=0 // pred_fallthru
    _
  // Predicated region
  $region62: #{goal_global_forward.1} parent=0 // pred_check
    _
  $region63: #{goal_global_forward.1} parent=0 // pred_check_branch
    %1338 = sbr.rel (0) target = $region65
  $region64: #{goal_global_forward.1} parent=0 // pred_region
    _
  $region65: #{goal_global_forward.1} parent=0 // pred_fallthru
    _

</llo_original>
